<compile_context>
chip_gen: v6e
topology: v6e:2x2x1
jax: 0.10.0
libtpu: 0.0.40
codegen_flags: <defaults>
</compile_context>

<pallas_src>
import functools

import jax
import jax.numpy as jnp
import numpy as np
from jax import lax
from jax.experimental import pallas as pl
from jax.experimental.pallas import tpu as pltpu


# --------------------------------------------------------------------------
# Helpers
# --------------------------------------------------------------------------
def _round_up(x, m):
    return ((x + m - 1) // m) * m


def _tile_vmem_bytes(shape, itemsize):
    """Conservative VMEM footprint of one block: minor dim padded to 128
    lanes, second-minor to 8 sublanes."""
    s = [int(d) for d in shape]
    if len(s) >= 1:
        s[-1] = _round_up(s[-1], 128)
    if len(s) >= 2:
        s[-2] = _round_up(s[-2], 8)
    n = 1
    for d in s:
        n *= d
    return n * itemsize


def _vmem_capacity_bytes():
    try:
        return int(pltpu.get_tpu_info().vmem_capacity_bytes)
    except Exception:
        return 64 * 1024 * 1024  # conservative: v7x per-core VMEM


def _is_v5():
    try:
        return "v5" in jax.devices()[0].device_kind.lower()
    except Exception:
        return False


def _pick_q_tile(nq, nk, *, GH, H, D, gh_blk, has_bias, w_item, io_item,
                 out_item, w_bufs, budget, max_q_tile):
    """Largest power-of-two q-tile dividing nq that fits the VMEM budget."""
    cands = [t for t in (512, 256, 128, 64, 32, 16, 8)
             if t <= max_q_tile and nq % t == 0]
    if not cands:
        cands = [nq]
    for tq in cands:
        need = (
            _tile_vmem_bytes((GH, H, tq, nk), w_item) * w_bufs            # W
            + _tile_vmem_bytes((GH, tq, D), io_item) * 2                  # q
            + _tile_vmem_bytes((GH, D, nk), io_item) * 2                  # k^T
            + _tile_vmem_bytes((H, tq, nk), out_item) * 2                 # out
            + (GH + 2) * _tile_vmem_bytes((tq, nk), 4)                    # f32 temps
            + (_tile_vmem_bytes((gh_blk, tq, nk), io_item) * 2 if has_bias else 0)
        )
        if need <= budget:
            return tq
    return cands[-1]


# --------------------------------------------------------------------------
# Kernel
# --------------------------------------------------------------------------
def _global_attn_mix_kernel(w_ref, q_ref, k_ref, *rest, GH, H, has_bias,
                            bias_gh_bcast, mix_f32, temperature):
    """One grid step handles one (query-tile, batch) pair.

    w_ref    : VMEM [GH, H, TQ, Nk]    batch-invariant mixing weights
    q_ref    : VMEM [GH, TQ, D]        (batch dim squeezed by BlockSpec)
    k_ref    : VMEM [GH, D, Nk]        (pre-transposed: Nk on the lane axis)
    bias_ref : VMEM [GHb, TQ, Nk]      optional, GHb in {1, GH}
    o_ref    : VMEM [H, TQ, Nk]
    """
    if has_bias:
        bias_ref, o_ref = rest
    else:
        (o_ref,) = rest
        bias_ref = None

    mix_dtype = jnp.float32 if mix_f32 else w_ref.dtype

    # Phase 1: all GH attention planes (f32 MXU accumulation); temperature and
    # bias are fused in f32; a single cast to the mixing dtype per plane.
    planes = []
    for g in range(GH):
        a = lax.dot_general(q_ref[g], k_ref[g],
                            (((1,), (0,)), ((), ())),
                            preferred_element_type=jnp.float32)   # [TQ, Nk] f32
        if temperature is not None:
            a = a * temperature
        if bias_ref is not None:
            b = bias_ref[0] if bias_gh_bcast else bias_ref[g]
            a = a + b.astype(jnp.float32)
        planes.append(a.astype(mix_dtype))

    # Phase 2: ONE fused expression (and one lane-dense store) per local head.
    for h in range(H):
        acc = planes[0] * w_ref[0, h].astype(mix_dtype)
        for g in range(1, GH):
            acc = acc + planes[g] * w_ref[g, h].astype(mix_dtype)
        o_ref[h] = acc.astype(o_ref.dtype)


# --------------------------------------------------------------------------
# Wrapper
# --------------------------------------------------------------------------
def global_attn_mix(q, k, masks, mask_proj, *, temperature=None,
                    attn_bias_add=None, max_q_tile=256,
                    vmem_limit_bytes=None, single_buffer_w=True):
    """Pallas version of Global_Attn.forward ('mix', non_linear=False).

    q, k:          [B, GH, N, D]
    masks:         [Nq, Nk, L]
    mask_proj:     [L, GH * H]
    attn_bias_add: broadcastable to [B, GH, Nq, Nk] (optional)
    returns:       [B, H, Nq, Nk] in q.dtype
    """
    B, GH, Nq, D = q.shape
    Nk = k.shape[2]
    H = mask_proj.shape[-1] // GH
    has_bias = attn_bias_add is not None
    out_dtype = q.dtype

    # f32 mixing for f32 inputs and on v5e (no bf16 VPU); packed-bf16 mixing
    # on v6e/v7x when inputs are bf16.  W stays narrow in HBM/VMEM either way.
    mix_f32 = (q.dtype == jnp.float32) or _is_v5()
    w_dtype = q.dtype

    # Temperature: applied to the f32 matmul output inside the kernel when it
    # is a static scalar (most faithful to the f32 reference).
    # TODO(synk): plumb traced temperature through SMEM; fallback folds it into q.
    temp_static = None
    if temperature is not None:
        try:
            temp_static = float(temperature)
        except Exception:
            q = q * jnp.asarray(temperature, dtype=q.dtype)

    # ---- ragged-shape padding (keeps output stores lane-dense) ------------
    Nq_p = _round_up(Nq, 8)
    Nk_p = _round_up(Nk, 128) if (Nk % 128 != 0 and Nk >= 128) else Nk
    if Nq_p != Nq:
        q = jnp.pad(q, ((0, 0), (0, 0), (0, Nq_p - Nq), (0, 0)))
    kt = jnp.swapaxes(k, -1, -2)                         # [B, GH, D, Nk]
    if Nk_p != Nk:
        kt = jnp.pad(kt, ((0, 0), (0, 0), (0, 0), (0, Nk_p - Nk)))
    if Nq_p != Nq or Nk_p != Nk:
        masks = jnp.pad(masks, ((0, Nq_p - Nq), (0, Nk_p - Nk), (0, 0)))

    # ---- batch-invariant mixing weights, hoisted out of the kernel ---------
    #   W[g, h, i, j] = sum_l masks[i, j, l] * mask_proj[l, g*H + h]
    W = jnp.einsum('ijl,lk->kij', masks.astype(jnp.float32),
                   mask_proj.astype(jnp.float32))
    W = W.reshape(GH, H, Nq_p, Nk_p).astype(w_dtype)

    # ---- bias: keep broadcast batch / global-head dims at size 1 -----------
    bias = None
    bias_gh_bcast = False
    bias_b_bcast = False
    gh_blk = GH
    if has_bias:
        bias = jnp.asarray(attn_bias_add)
        if bias.ndim < 4:
            bias = bias.reshape((1,) * (4 - bias.ndim) + bias.shape)
        Bb, GHb, Nqb, Nkb = bias.shape
        if (Nqb, Nkb) != (Nq, Nk):
            bias = jnp.broadcast_to(bias, (Bb, GHb, Nq, Nk))
        if Nq_p != Nq or Nk_p != Nk:
            bias = jnp.pad(bias, ((0, 0), (0, 0), (0, Nq_p - Nq), (0, Nk_p - Nk)))
        bias_b_bcast = (Bb == 1)
        bias_gh_bcast = (GHb == 1)
        gh_blk = 1 if bias_gh_bcast else GH

    # ---- tile picking against a per-generation VMEM budget -----------------
    vmem_cap = _vmem_capacity_bytes()
    vmem_budget = (vmem_cap * 3) // 4
    io_item = jnp.dtype(q.dtype).itemsize
    TQ = _pick_q_tile(
        Nq_p, Nk_p, GH=GH, H=H, D=D, gh_blk=gh_blk, has_bias=has_bias,
        w_item=jnp.dtype(w_dtype).itemsize, io_item=io_item,
        out_item=jnp.dtype(out_dtype).itemsize,
        w_bufs=1 if single_buffer_w else 2,
        budget=vmem_budget, max_q_tile=max_q_tile)
    grid = (Nq_p // TQ, B)   # batch innermost -> W / broadcast bias stay resident
    if vmem_limit_bytes is None:
        vmem_limit_bytes = int(vmem_budget)

    kernel = functools.partial(
        _global_attn_mix_kernel, GH=GH, H=H, has_bias=has_bias,
        bias_gh_bcast=bias_gh_bcast, mix_f32=mix_f32, temperature=temp_static)

    def _run(w_pipeline_mode):
        w_kwargs = {} if w_pipeline_mode is None else dict(pipeline_mode=w_pipeline_mode)
        in_specs = [
            pl.BlockSpec((GH, H, TQ, Nk_p), lambda qi, b: (0, 0, qi, 0),
                         **w_kwargs),                                        # W
            pl.BlockSpec((None, GH, TQ, D), lambda qi, b: (b, 0, qi, 0)),    # q
            pl.BlockSpec((None, GH, D, Nk_p), lambda qi, b: (b, 0, 0, 0)),   # k^T
        ]
        args = [W, q, kt]
        if has_bias:
            bias_idx = ((lambda qi, b: (0, 0, qi, 0)) if bias_b_bcast
                        else (lambda qi, b: (b, 0, qi, 0)))
            in_specs.append(pl.BlockSpec((None, gh_blk, TQ, Nk_p), bias_idx))
            args.append(bias)
        return pl.pallas_call(
            kernel,
            out_shape=jax.ShapeDtypeStruct((B, H, Nq_p, Nk_p), out_dtype),
            grid=grid,
            in_specs=in_specs,
            out_specs=pl.BlockSpec((None, H, TQ, Nk_p),
                                   lambda qi, b: (b, 0, qi, 0)),
            compiler_params=pltpu.CompilerParams(
                dimension_semantics=("parallel", "arbitrary"),
                vmem_limit_bytes=int(vmem_limit_bytes)),
        )(*args)

    if single_buffer_w:
        try:
            out = jax.block_until_ready(_run(pl.Buffered(1)))
        except Exception:
            # TODO(synk): pipeline_mode=pl.Buffered(1) unsupported on this jax
            # build -- fall back to default double-buffering of W.
            out = _run(None)
    else:
        out = _run(None)

    if Nq_p != Nq or Nk_p != Nk:
        out = out[:, :, :Nq, :Nk]
    return out


# --------------------------------------------------------------------------
# Plain-JAX reference (transcription of the PyTorch forward, 'mix' path)
# --------------------------------------------------------------------------
def _reference(q, k, masks, mask_proj, temperature=None, attn_bias_add=None):
    B, GH, Nq, _ = q.shape
    Nk = k.shape[2]
    H = mask_proj.shape[-1] // GH
    attn = jnp.einsum('bgnd,bgmd->bgnm', q, k)
    if temperature is not None:
        attn = attn * temperature
    if attn_bias_add is not None:
        attn = attn + attn_bias_add
    mw = jnp.einsum('nml,lk->nmk', masks, mask_proj).reshape(1, Nq, Nk, GH, H)
    a = jnp.transpose(attn, (0, 2, 3, 1))[..., None] * mw     # [B,Nq,Nk,GH,H]
    a = jnp.sum(a, axis=-2)                                   # [B,Nq,Nk,H]
    return jnp.transpose(a, (0, 3, 1, 2))                     # [B,H,Nq,Nk]


if __name__ == "__main__":
    key = jax.random.PRNGKey(0)
    kq, kk, km, kp, kb, key2 = jax.random.split(key, 6)

    # --- test 1: module defaults (local_heads=4, global_heads=2, levels=3) --
    B, GH, H, N, D, L = 2, 2, 4, 16, 16, 3
    q = jax.random.normal(kq, (B, GH, N, D), dtype=jnp.float32)
    k = jax.random.normal(kk, (B, GH, N, D), dtype=jnp.float32)
    masks = jax.random.uniform(km, (N, N, L), dtype=jnp.float32)
    mask_proj = jax.random.normal(kp, (L, GH * H), dtype=jnp.float32) * 0.1 + 1.0
    attn_bias = jax.random.normal(kb, (B, GH, N, N), dtype=jnp.float32) * 0.1
    temperature = 0.5

    out = global_attn_mix(q, k, masks, mask_proj,
                          temperature=temperature, attn_bias_add=attn_bias)
    out = jax.block_until_ready(out)
    ref = _reference(q, k, masks, mask_proj,
                     temperature=temperature, attn_bias_add=attn_bias)
    assert out.shape == (B, H, N, N), out.shape
    assert np.allclose(np.asarray(out), np.asarray(ref), rtol=2e-3, atol=2e-3), (
        float(np.max(np.abs(np.asarray(out) - np.asarray(ref)))))

    # --- test 2: ragged Nq (padding path) + batch/GH-broadcast bias ---------
    B2, GH2, H2, Nq2, Nk2, D2, L2 = 1, 2, 4, 20, 16, 16, 3
    kq2, kk2, km2, kp2, kb2 = jax.random.split(key2, 5)
    q2 = jax.random.normal(kq2, (B2, GH2, Nq2, D2), dtype=jnp.float32)
    k2 = jax.random.normal(kk2, (B2, GH2, Nk2, D2), dtype=jnp.float32)
    masks2 = jax.random.uniform(km2, (Nq2, Nk2, L2), dtype=jnp.float32)
    mask_proj2 = jax.random.normal(kp2, (L2, GH2 * H2), dtype=jnp.float32) * 0.1 + 1.0
    bias2 = jax.random.normal(kb2, (1, 1, Nq2, Nk2), dtype=jnp.float32) * 0.1

    out2 = global_attn_mix(q2, k2, masks2, mask_proj2, attn_bias_add=bias2)
    out2 = jax.block_until_ready(out2)
    ref2 = _reference(q2, k2, masks2, mask_proj2, attn_bias_add=bias2)
    assert out2.shape == (B2, H2, Nq2, Nk2), out2.shape
    assert np.allclose(np.asarray(out2), np.asarray(ref2), rtol=2e-3, atol=2e-3), (
        float(np.max(np.abs(np.asarray(out2) - np.asarray(ref2)))))

    print("KERNEL_OK")
</pallas_src>

<mosaic_0001>
module attributes {stable_mosaic.version = 11 : i64} {
  func.func @_global_attn_mix_kernel(%arg0: i32, %arg1: i32, %arg2: memref<2x4x16x16xf32, #tpu.memory_space<vmem>>, %arg3: memref<1x2x16x16xf32, #tpu.memory_space<vmem>>, %arg4: memref<1x2x16x16xf32, #tpu.memory_space<vmem>>, %arg5: memref<1x2x16x16xf32, #tpu.memory_space<vmem>>, %arg6: memref<1x4x16x16xf32, #tpu.memory_space<vmem>>) attributes {dimension_semantics = [#tpu.dimension_semantics<parallel>, #tpu.dimension_semantics<arbitrary>], iteration_bounds = array<i64: 1, 2>, scalar_prefetch = 0 : i64, scratch_operands = 0 : i64, tpu.core_type = #tpu.core_type<tc>, window_params = [{pipeline_mode = #tpu.pipeline_mode<synchronous>, transform_indices = @transform_0, window_bounds = array<i64: 2, 4, 16, 16>}, {transform_indices = @transform_1, window_bounds = array<i64: 1, 2, 16, 16>}, {transform_indices = @transform_2, window_bounds = array<i64: 1, 2, 16, 16>}, {transform_indices = @transform_3, window_bounds = array<i64: 1, 2, 16, 16>}, {transform_indices = @transform_4, window_bounds = array<i64: 1, 4, 16, 16>}]} {
    %c0 = arith.constant 0 : index
    %c0_0 = arith.constant 0 : index
    %c0_1 = arith.constant 0 : index
    %c0_2 = arith.constant 0 : index
    %0 = vector.load %arg3[%c0, %c0_0, %c0_1, %c0_2] : memref<1x2x16x16xf32, #tpu.memory_space<vmem>>, vector<1x1x16x16xf32>
    %1 = vector.shape_cast %0 : vector<1x1x16x16xf32> to vector<16x16xf32>
    %c0_3 = arith.constant 0 : index
    %c0_4 = arith.constant 0 : index
    %c0_5 = arith.constant 0 : index
    %c0_6 = arith.constant 0 : index
    %2 = vector.load %arg4[%c0_3, %c0_4, %c0_5, %c0_6] : memref<1x2x16x16xf32, #tpu.memory_space<vmem>>, vector<1x1x16x16xf32>
    %3 = vector.shape_cast %2 : vector<1x1x16x16xf32> to vector<16x16xf32>
    %cst = arith.constant dense<0.000000e+00> : vector<16x16xf32>
    %4 = tpu.matmul %1, %3, %cst {dimension_numbers = #tpu.dot_dimension_numbers<[1], [0], [0], [1], [0, 0, 1, 1], [], []>} : vector<16x16xf32>, vector<16x16xf32>, vector<16x16xf32> -> vector<16x16xf32>
    %cst_7 = arith.constant 5.000000e-01 : f32
    %5 = vector.broadcast %cst_7 : f32 to vector<16x16xf32>
    %6 = arith.mulf %4, %5 : vector<16x16xf32>
    %c0_8 = arith.constant 0 : index
    %c0_9 = arith.constant 0 : index
    %c0_10 = arith.constant 0 : index
    %c0_11 = arith.constant 0 : index
    %7 = vector.load %arg5[%c0_8, %c0_9, %c0_10, %c0_11] : memref<1x2x16x16xf32, #tpu.memory_space<vmem>>, vector<1x1x16x16xf32>
    %8 = vector.shape_cast %7 : vector<1x1x16x16xf32> to vector<16x16xf32>
    %9 = arith.addf %6, %8 : vector<16x16xf32>
    %c0_12 = arith.constant 0 : index
    %c1 = arith.constant 1 : index
    %c0_13 = arith.constant 0 : index
    %c0_14 = arith.constant 0 : index
    %10 = vector.load %arg3[%c0_12, %c1, %c0_13, %c0_14] : memref<1x2x16x16xf32, #tpu.memory_space<vmem>>, vector<1x1x16x16xf32>
    %11 = vector.shape_cast %10 : vector<1x1x16x16xf32> to vector<16x16xf32>
    %c0_15 = arith.constant 0 : index
    %c1_16 = arith.constant 1 : index
    %c0_17 = arith.constant 0 : index
    %c0_18 = arith.constant 0 : index
    %12 = vector.load %arg4[%c0_15, %c1_16, %c0_17, %c0_18] : memref<1x2x16x16xf32, #tpu.memory_space<vmem>>, vector<1x1x16x16xf32>
    %13 = vector.shape_cast %12 : vector<1x1x16x16xf32> to vector<16x16xf32>
    %cst_19 = arith.constant dense<0.000000e+00> : vector<16x16xf32>
    %14 = tpu.matmul %11, %13, %cst_19 {dimension_numbers = #tpu.dot_dimension_numbers<[1], [0], [0], [1], [0, 0, 1, 1], [], []>} : vector<16x16xf32>, vector<16x16xf32>, vector<16x16xf32> -> vector<16x16xf32>
    %cst_20 = arith.constant 5.000000e-01 : f32
    %15 = vector.broadcast %cst_20 : f32 to vector<16x16xf32>
    %16 = arith.mulf %14, %15 : vector<16x16xf32>
    %c0_21 = arith.constant 0 : index
    %c1_22 = arith.constant 1 : index
    %c0_23 = arith.constant 0 : index
    %c0_24 = arith.constant 0 : index
    %17 = vector.load %arg5[%c0_21, %c1_22, %c0_23, %c0_24] : memref<1x2x16x16xf32, #tpu.memory_space<vmem>>, vector<1x1x16x16xf32>
    %18 = vector.shape_cast %17 : vector<1x1x16x16xf32> to vector<16x16xf32>
    %19 = arith.addf %16, %18 : vector<16x16xf32>
    %c0_25 = arith.constant 0 : index
    %c0_26 = arith.constant 0 : index
    %c0_27 = arith.constant 0 : index
    %c0_28 = arith.constant 0 : index
    %20 = vector.load %arg2[%c0_25, %c0_26, %c0_27, %c0_28] : memref<2x4x16x16xf32, #tpu.memory_space<vmem>>, vector<1x1x16x16xf32>
    %21 = vector.shape_cast %20 : vector<1x1x16x16xf32> to vector<16x16xf32>
    %22 = arith.mulf %9, %21 : vector<16x16xf32>
    %c1_29 = arith.constant 1 : index
    %c0_30 = arith.constant 0 : index
    %c0_31 = arith.constant 0 : index
    %c0_32 = arith.constant 0 : index
    %23 = vector.load %arg2[%c1_29, %c0_30, %c0_31, %c0_32] : memref<2x4x16x16xf32, #tpu.memory_space<vmem>>, vector<1x1x16x16xf32>
    %24 = vector.shape_cast %23 : vector<1x1x16x16xf32> to vector<16x16xf32>
    %25 = arith.mulf %19, %24 : vector<16x16xf32>
    %26 = arith.addf %22, %25 : vector<16x16xf32>
    %c0_33 = arith.constant 0 : index
    %c0_34 = arith.constant 0 : index
    %c0_35 = arith.constant 0 : index
    %c0_36 = arith.constant 0 : index
    %27 = vector.load %arg6[%c0_33, %c0_34, %c0_35, %c0_36] : memref<1x4x16x16xf32, #tpu.memory_space<vmem>>, vector<1x1x16x16xf32>
    %28 = vector.shape_cast %27 : vector<1x1x16x16xf32> to vector<16x16xf32>
    %29 = vector.shape_cast %26 : vector<16x16xf32> to vector<1x1x16x16xf32>
    tpu.vector_store %arg6[%c0_33, %c0_34, %c0_35, %c0_36], %29 {strides = array<i32>} : memref<1x4x16x16xf32, #tpu.memory_space<vmem>>, vector<1x1x16x16xf32>,
    %c0_37 = arith.constant 0 : index
    %c1_38 = arith.constant 1 : index
    %c0_39 = arith.constant 0 : index
    %c0_40 = arith.constant 0 : index
    %30 = vector.load %arg2[%c0_37, %c1_38, %c0_39, %c0_40] : memref<2x4x16x16xf32, #tpu.memory_space<vmem>>, vector<1x1x16x16xf32>
    %31 = vector.shape_cast %30 : vector<1x1x16x16xf32> to vector<16x16xf32>
    %32 = arith.mulf %9, %31 : vector<16x16xf32>
    %c1_41 = arith.constant 1 : index
    %c1_42 = arith.constant 1 : index
    %c0_43 = arith.constant 0 : index
    %c0_44 = arith.constant 0 : index
    %33 = vector.load %arg2[%c1_41, %c1_42, %c0_43, %c0_44] : memref<2x4x16x16xf32, #tpu.memory_space<vmem>>, vector<1x1x16x16xf32>
    %34 = vector.shape_cast %33 : vector<1x1x16x16xf32> to vector<16x16xf32>
    %35 = arith.mulf %19, %34 : vector<16x16xf32>
    %36 = arith.addf %32, %35 : vector<16x16xf32>
    %c0_45 = arith.constant 0 : index
    %c1_46 = arith.constant 1 : index
    %c0_47 = arith.constant 0 : index
    %c0_48 = arith.constant 0 : index
    %37 = vector.load %arg6[%c0_45, %c1_46, %c0_47, %c0_48] : memref<1x4x16x16xf32, #tpu.memory_space<vmem>>, vector<1x1x16x16xf32>
    %38 = vector.shape_cast %37 : vector<1x1x16x16xf32> to vector<16x16xf32>
    %39 = vector.shape_cast %36 : vector<16x16xf32> to vector<1x1x16x16xf32>
    tpu.vector_store %arg6[%c0_45, %c1_46, %c0_47, %c0_48], %39 {strides = array<i32>} : memref<1x4x16x16xf32, #tpu.memory_space<vmem>>, vector<1x1x16x16xf32>,
    %c0_49 = arith.constant 0 : index
    %c2 = arith.constant 2 : index
    %c0_50 = arith.constant 0 : index
    %c0_51 = arith.constant 0 : index
    %40 = vector.load %arg2[%c0_49, %c2, %c0_50, %c0_51] : memref<2x4x16x16xf32, #tpu.memory_space<vmem>>, vector<1x1x16x16xf32>
    %41 = vector.shape_cast %40 : vector<1x1x16x16xf32> to vector<16x16xf32>
    %42 = arith.mulf %9, %41 : vector<16x16xf32>
    %c1_52 = arith.constant 1 : index
    %c2_53 = arith.constant 2 : index
    %c0_54 = arith.constant 0 : index
    %c0_55 = arith.constant 0 : index
    %43 = vector.load %arg2[%c1_52, %c2_53, %c0_54, %c0_55] : memref<2x4x16x16xf32, #tpu.memory_space<vmem>>, vector<1x1x16x16xf32>
    %44 = vector.shape_cast %43 : vector<1x1x16x16xf32> to vector<16x16xf32>
    %45 = arith.mulf %19, %44 : vector<16x16xf32>
    %46 = arith.addf %42, %45 : vector<16x16xf32>
    %c0_56 = arith.constant 0 : index
    %c2_57 = arith.constant 2 : index
    %c0_58 = arith.constant 0 : index
    %c0_59 = arith.constant 0 : index
    %47 = vector.load %arg6[%c0_56, %c2_57, %c0_58, %c0_59] : memref<1x4x16x16xf32, #tpu.memory_space<vmem>>, vector<1x1x16x16xf32>
    %48 = vector.shape_cast %47 : vector<1x1x16x16xf32> to vector<16x16xf32>
    %49 = vector.shape_cast %46 : vector<16x16xf32> to vector<1x1x16x16xf32>
    tpu.vector_store %arg6[%c0_56, %c2_57, %c0_58, %c0_59], %49 {strides = array<i32>} : memref<1x4x16x16xf32, #tpu.memory_space<vmem>>, vector<1x1x16x16xf32>,
    %c0_60 = arith.constant 0 : index
    %c3 = arith.constant 3 : index
    %c0_61 = arith.constant 0 : index
    %c0_62 = arith.constant 0 : index
    %50 = vector.load %arg2[%c0_60, %c3, %c0_61, %c0_62] : memref<2x4x16x16xf32, #tpu.memory_space<vmem>>, vector<1x1x16x16xf32>
    %51 = vector.shape_cast %50 : vector<1x1x16x16xf32> to vector<16x16xf32>
    %52 = arith.mulf %9, %51 : vector<16x16xf32>
    %c1_63 = arith.constant 1 : index
    %c3_64 = arith.constant 3 : index
    %c0_65 = arith.constant 0 : index
    %c0_66 = arith.constant 0 : index
    %53 = vector.load %arg2[%c1_63, %c3_64, %c0_65, %c0_66] : memref<2x4x16x16xf32, #tpu.memory_space<vmem>>, vector<1x1x16x16xf32>
    %54 = vector.shape_cast %53 : vector<1x1x16x16xf32> to vector<16x16xf32>
    %55 = arith.mulf %19, %54 : vector<16x16xf32>
    %56 = arith.addf %52, %55 : vector<16x16xf32>
    %c0_67 = arith.constant 0 : index
    %c3_68 = arith.constant 3 : index
    %c0_69 = arith.constant 0 : index
    %c0_70 = arith.constant 0 : index
    %57 = vector.load %arg6[%c0_67, %c3_68, %c0_69, %c0_70] : memref<1x4x16x16xf32, #tpu.memory_space<vmem>>, vector<1x1x16x16xf32>
    %58 = vector.shape_cast %57 : vector<1x1x16x16xf32> to vector<16x16xf32>
    %59 = vector.shape_cast %56 : vector<16x16xf32> to vector<1x1x16x16xf32>
    tpu.vector_store %arg6[%c0_67, %c3_68, %c0_69, %c0_70], %59 {strides = array<i32>} : memref<1x4x16x16xf32, #tpu.memory_space<vmem>>, vector<1x1x16x16xf32>,
    return
  }
  func.func @transform_0(%arg0: i32, %arg1: i32) -> (i32, i32, i32, i32) {
    %c0_i32 = arith.constant 0 : i32
    %c0_i32_0 = arith.constant 0 : i32
    %c0_i32_1 = arith.constant 0 : i32
    %c0_i32_2 = arith.constant 0 : i32
    return %c0_i32, %c0_i32_0, %arg0, %c0_i32_1 : i32, i32, i32, i32
  }
  func.func @transform_1(%arg0: i32, %arg1: i32) -> (i32, i32, i32, i32) {
    %c0_i32 = arith.constant 0 : i32
    %c0_i32_0 = arith.constant 0 : i32
    %c0_i32_1 = arith.constant 0 : i32
    return %arg1, %c0_i32, %arg0, %c0_i32_0 : i32, i32, i32, i32
  }
  func.func @transform_2(%arg0: i32, %arg1: i32) -> (i32, i32, i32, i32) {
    %c0_i32 = arith.constant 0 : i32
    %c0_i32_0 = arith.constant 0 : i32
    %c0_i32_1 = arith.constant 0 : i32
    %c0_i32_2 = arith.constant 0 : i32
    return %arg1, %c0_i32, %c0_i32_0, %c0_i32_1 : i32, i32, i32, i32
  }
  func.func @transform_3(%arg0: i32, %arg1: i32) -> (i32, i32, i32, i32) {
    %c0_i32 = arith.constant 0 : i32
    %c0_i32_0 = arith.constant 0 : i32
    %c0_i32_1 = arith.constant 0 : i32
    return %arg1, %c0_i32, %arg0, %c0_i32_0 : i32, i32, i32, i32
  }
  func.func @transform_4(%arg0: i32, %arg1: i32) -> (i32, i32, i32, i32) {
    %c0_i32 = arith.constant 0 : i32
    %c0_i32_0 = arith.constant 0 : i32
    %c0_i32_1 = arith.constant 0 : i32
    return %arg1, %c0_i32, %arg0, %c0_i32_0 : i32, i32, i32, i32
  }
}

module attributes {stable_mosaic.version = 11 : i64} {
  func.func @_global_attn_mix_kernel(%arg0: i32, %arg1: i32, %arg2: memref<2x4x16x16xf32, #tpu.memory_space<vmem>>, %arg3: memref<1x2x16x16xf32, #tpu.memory_space<vmem>>, %arg4: memref<1x2x16x16xf32, #tpu.memory_space<vmem>>, %arg5: memref<1x2x16x16xf32, #tpu.memory_space<vmem>>, %arg6: memref<1x4x16x16xf32, #tpu.memory_space<vmem>>) attributes {dimension_semantics = [#tpu.dimension_semantics<parallel>, #tpu.dimension_semantics<arbitrary>], iteration_bounds = array<i64: 1, 2>, scalar_prefetch = 0 : i64, scratch_operands = 0 : i64, tpu.core_type = #tpu.core_type<tc>, window_params = [{transform_indices = @transform_0, window_bounds = array<i64: 2, 4, 16, 16>}, {transform_indices = @transform_1, window_bounds = array<i64: 1, 2, 16, 16>}, {transform_indices = @transform_2, window_bounds = array<i64: 1, 2, 16, 16>}, {transform_indices = @transform_3, window_bounds = array<i64: 1, 2, 16, 16>}, {transform_indices = @transform_4, window_bounds = array<i64: 1, 4, 16, 16>}]} {
    %c0 = arith.constant 0 : index
    %c0_0 = arith.constant 0 : index
    %c0_1 = arith.constant 0 : index
    %c0_2 = arith.constant 0 : index
    %0 = vector.load %arg3[%c0, %c0_0, %c0_1, %c0_2] : memref<1x2x16x16xf32, #tpu.memory_space<vmem>>, vector<1x1x16x16xf32>
    %1 = vector.shape_cast %0 : vector<1x1x16x16xf32> to vector<16x16xf32>
    %c0_3 = arith.constant 0 : index
    %c0_4 = arith.constant 0 : index
    %c0_5 = arith.constant 0 : index
    %c0_6 = arith.constant 0 : index
    %2 = vector.load %arg4[%c0_3, %c0_4, %c0_5, %c0_6] : memref<1x2x16x16xf32, #tpu.memory_space<vmem>>, vector<1x1x16x16xf32>
    %3 = vector.shape_cast %2 : vector<1x1x16x16xf32> to vector<16x16xf32>
    %cst = arith.constant dense<0.000000e+00> : vector<16x16xf32>
    %4 = tpu.matmul %1, %3, %cst {dimension_numbers = #tpu.dot_dimension_numbers<[1], [0], [0], [1], [0, 0, 1, 1], [], []>} : vector<16x16xf32>, vector<16x16xf32>, vector<16x16xf32> -> vector<16x16xf32>
    %cst_7 = arith.constant 5.000000e-01 : f32
    %5 = vector.broadcast %cst_7 : f32 to vector<16x16xf32>
    %6 = arith.mulf %4, %5 : vector<16x16xf32>
    %c0_8 = arith.constant 0 : index
    %c0_9 = arith.constant 0 : index
    %c0_10 = arith.constant 0 : index
    %c0_11 = arith.constant 0 : index
    %7 = vector.load %arg5[%c0_8, %c0_9, %c0_10, %c0_11] : memref<1x2x16x16xf32, #tpu.memory_space<vmem>>, vector<1x1x16x16xf32>
    %8 = vector.shape_cast %7 : vector<1x1x16x16xf32> to vector<16x16xf32>
    %9 = arith.addf %6, %8 : vector<16x16xf32>
    %c0_12 = arith.constant 0 : index
    %c1 = arith.constant 1 : index
    %c0_13 = arith.constant 0 : index
    %c0_14 = arith.constant 0 : index
    %10 = vector.load %arg3[%c0_12, %c1, %c0_13, %c0_14] : memref<1x2x16x16xf32, #tpu.memory_space<vmem>>, vector<1x1x16x16xf32>
    %11 = vector.shape_cast %10 : vector<1x1x16x16xf32> to vector<16x16xf32>
    %c0_15 = arith.constant 0 : index
    %c1_16 = arith.constant 1 : index
    %c0_17 = arith.constant 0 : index
    %c0_18 = arith.constant 0 : index
    %12 = vector.load %arg4[%c0_15, %c1_16, %c0_17, %c0_18] : memref<1x2x16x16xf32, #tpu.memory_space<vmem>>, vector<1x1x16x16xf32>
    %13 = vector.shape_cast %12 : vector<1x1x16x16xf32> to vector<16x16xf32>
    %cst_19 = arith.constant dense<0.000000e+00> : vector<16x16xf32>
    %14 = tpu.matmul %11, %13, %cst_19 {dimension_numbers = #tpu.dot_dimension_numbers<[1], [0], [0], [1], [0, 0, 1, 1], [], []>} : vector<16x16xf32>, vector<16x16xf32>, vector<16x16xf32> -> vector<16x16xf32>
    %cst_20 = arith.constant 5.000000e-01 : f32
    %15 = vector.broadcast %cst_20 : f32 to vector<16x16xf32>
    %16 = arith.mulf %14, %15 : vector<16x16xf32>
    %c0_21 = arith.constant 0 : index
    %c1_22 = arith.constant 1 : index
    %c0_23 = arith.constant 0 : index
    %c0_24 = arith.constant 0 : index
    %17 = vector.load %arg5[%c0_21, %c1_22, %c0_23, %c0_24] : memref<1x2x16x16xf32, #tpu.memory_space<vmem>>, vector<1x1x16x16xf32>
    %18 = vector.shape_cast %17 : vector<1x1x16x16xf32> to vector<16x16xf32>
    %19 = arith.addf %16, %18 : vector<16x16xf32>
    %c0_25 = arith.constant 0 : index
    %c0_26 = arith.constant 0 : index
    %c0_27 = arith.constant 0 : index
    %c0_28 = arith.constant 0 : index
    %20 = vector.load %arg2[%c0_25, %c0_26, %c0_27, %c0_28] : memref<2x4x16x16xf32, #tpu.memory_space<vmem>>, vector<1x1x16x16xf32>
    %21 = vector.shape_cast %20 : vector<1x1x16x16xf32> to vector<16x16xf32>
    %22 = arith.mulf %9, %21 : vector<16x16xf32>
    %c1_29 = arith.constant 1 : index
    %c0_30 = arith.constant 0 : index
    %c0_31 = arith.constant 0 : index
    %c0_32 = arith.constant 0 : index
    %23 = vector.load %arg2[%c1_29, %c0_30, %c0_31, %c0_32] : memref<2x4x16x16xf32, #tpu.memory_space<vmem>>, vector<1x1x16x16xf32>
    %24 = vector.shape_cast %23 : vector<1x1x16x16xf32> to vector<16x16xf32>
    %25 = arith.mulf %19, %24 : vector<16x16xf32>
    %26 = arith.addf %22, %25 : vector<16x16xf32>
    %c0_33 = arith.constant 0 : index
    %c0_34 = arith.constant 0 : index
    %c0_35 = arith.constant 0 : index
    %c0_36 = arith.constant 0 : index
    %27 = vector.load %arg6[%c0_33, %c0_34, %c0_35, %c0_36] : memref<1x4x16x16xf32, #tpu.memory_space<vmem>>, vector<1x1x16x16xf32>
    %28 = vector.shape_cast %27 : vector<1x1x16x16xf32> to vector<16x16xf32>
    %29 = vector.shape_cast %26 : vector<16x16xf32> to vector<1x1x16x16xf32>
    tpu.vector_store %arg6[%c0_33, %c0_34, %c0_35, %c0_36], %29 {strides = array<i32>} : memref<1x4x16x16xf32, #tpu.memory_space<vmem>>, vector<1x1x16x16xf32>,
    %c0_37 = arith.constant 0 : index
    %c1_38 = arith.constant 1 : index
    %c0_39 = arith.constant 0 : index
    %c0_40 = arith.constant 0 : index
    %30 = vector.load %arg2[%c0_37, %c1_38, %c0_39, %c0_40] : memref<2x4x16x16xf32, #tpu.memory_space<vmem>>, vector<1x1x16x16xf32>
    %31 = vector.shape_cast %30 : vector<1x1x16x16xf32> to vector<16x16xf32>
    %32 = arith.mulf %9, %31 : vector<16x16xf32>
    %c1_41 = arith.constant 1 : index
    %c1_42 = arith.constant 1 : index
    %c0_43 = arith.constant 0 : index
    %c0_44 = arith.constant 0 : index
    %33 = vector.load %arg2[%c1_41, %c1_42, %c0_43, %c0_44] : memref<2x4x16x16xf32, #tpu.memory_space<vmem>>, vector<1x1x16x16xf32>
    %34 = vector.shape_cast %33 : vector<1x1x16x16xf32> to vector<16x16xf32>
    %35 = arith.mulf %19, %34 : vector<16x16xf32>
    %36 = arith.addf %32, %35 : vector<16x16xf32>
    %c0_45 = arith.constant 0 : index
    %c1_46 = arith.constant 1 : index
    %c0_47 = arith.constant 0 : index
    %c0_48 = arith.constant 0 : index
    %37 = vector.load %arg6[%c0_45, %c1_46, %c0_47, %c0_48] : memref<1x4x16x16xf32, #tpu.memory_space<vmem>>, vector<1x1x16x16xf32>
    %38 = vector.shape_cast %37 : vector<1x1x16x16xf32> to vector<16x16xf32>
    %39 = vector.shape_cast %36 : vector<16x16xf32> to vector<1x1x16x16xf32>
    tpu.vector_store %arg6[%c0_45, %c1_46, %c0_47, %c0_48], %39 {strides = array<i32>} : memref<1x4x16x16xf32, #tpu.memory_space<vmem>>, vector<1x1x16x16xf32>,
    %c0_49 = arith.constant 0 : index
    %c2 = arith.constant 2 : index
    %c0_50 = arith.constant 0 : index
    %c0_51 = arith.constant 0 : index
    %40 = vector.load %arg2[%c0_49, %c2, %c0_50, %c0_51] : memref<2x4x16x16xf32, #tpu.memory_space<vmem>>, vector<1x1x16x16xf32>
    %41 = vector.shape_cast %40 : vector<1x1x16x16xf32> to vector<16x16xf32>
    %42 = arith.mulf %9, %41 : vector<16x16xf32>
    %c1_52 = arith.constant 1 : index
    %c2_53 = arith.constant 2 : index
    %c0_54 = arith.constant 0 : index
    %c0_55 = arith.constant 0 : index
    %43 = vector.load %arg2[%c1_52, %c2_53, %c0_54, %c0_55] : memref<2x4x16x16xf32, #tpu.memory_space<vmem>>, vector<1x1x16x16xf32>
    %44 = vector.shape_cast %43 : vector<1x1x16x16xf32> to vector<16x16xf32>
    %45 = arith.mulf %19, %44 : vector<16x16xf32>
    %46 = arith.addf %42, %45 : vector<16x16xf32>
    %c0_56 = arith.constant 0 : index
    %c2_57 = arith.constant 2 : index
    %c0_58 = arith.constant 0 : index
    %c0_59 = arith.constant 0 : index
    %47 = vector.load %arg6[%c0_56, %c2_57, %c0_58, %c0_59] : memref<1x4x16x16xf32, #tpu.memory_space<vmem>>, vector<1x1x16x16xf32>
    %48 = vector.shape_cast %47 : vector<1x1x16x16xf32> to vector<16x16xf32>
    %49 = vector.shape_cast %46 : vector<16x16xf32> to vector<1x1x16x16xf32>
    tpu.vector_store %arg6[%c0_56, %c2_57, %c0_58, %c0_59], %49 {strides = array<i32>} : memref<1x4x16x16xf32, #tpu.memory_space<vmem>>, vector<1x1x16x16xf32>,
    %c0_60 = arith.constant 0 : index
    %c3 = arith.constant 3 : index
    %c0_61 = arith.constant 0 : index
    %c0_62 = arith.constant 0 : index
    %50 = vector.load %arg2[%c0_60, %c3, %c0_61, %c0_62] : memref<2x4x16x16xf32, #tpu.memory_space<vmem>>, vector<1x1x16x16xf32>
    %51 = vector.shape_cast %50 : vector<1x1x16x16xf32> to vector<16x16xf32>
    %52 = arith.mulf %9, %51 : vector<16x16xf32>
    %c1_63 = arith.constant 1 : index
    %c3_64 = arith.constant 3 : index
    %c0_65 = arith.constant 0 : index
    %c0_66 = arith.constant 0 : index
    %53 = vector.load %arg2[%c1_63, %c3_64, %c0_65, %c0_66] : memref<2x4x16x16xf32, #tpu.memory_space<vmem>>, vector<1x1x16x16xf32>
    %54 = vector.shape_cast %53 : vector<1x1x16x16xf32> to vector<16x16xf32>
    %55 = arith.mulf %19, %54 : vector<16x16xf32>
    %56 = arith.addf %52, %55 : vector<16x16xf32>
    %c0_67 = arith.constant 0 : index
    %c3_68 = arith.constant 3 : index
    %c0_69 = arith.constant 0 : index
    %c0_70 = arith.constant 0 : index
    %57 = vector.load %arg6[%c0_67, %c3_68, %c0_69, %c0_70] : memref<1x4x16x16xf32, #tpu.memory_space<vmem>>, vector<1x1x16x16xf32>
    %58 = vector.shape_cast %57 : vector<1x1x16x16xf32> to vector<16x16xf32>
    %59 = vector.shape_cast %56 : vector<16x16xf32> to vector<1x1x16x16xf32>
    tpu.vector_store %arg6[%c0_67, %c3_68, %c0_69, %c0_70], %59 {strides = array<i32>} : memref<1x4x16x16xf32, #tpu.memory_space<vmem>>, vector<1x1x16x16xf32>,
    return
  }
  func.func @transform_0(%arg0: i32, %arg1: i32) -> (i32, i32, i32, i32) {
    %c0_i32 = arith.constant 0 : i32
    %c0_i32_0 = arith.constant 0 : i32
    %c0_i32_1 = arith.constant 0 : i32
    %c0_i32_2 = arith.constant 0 : i32
    return %c0_i32, %c0_i32_0, %arg0, %c0_i32_1 : i32, i32, i32, i32
  }
  func.func @transform_1(%arg0: i32, %arg1: i32) -> (i32, i32, i32, i32) {
    %c0_i32 = arith.constant 0 : i32
    %c0_i32_0 = arith.constant 0 : i32
    %c0_i32_1 = arith.constant 0 : i32
    return %arg1, %c0_i32, %arg0, %c0_i32_0 : i32, i32, i32, i32
  }
  func.func @transform_2(%arg0: i32, %arg1: i32) -> (i32, i32, i32, i32) {
    %c0_i32 = arith.constant 0 : i32
    %c0_i32_0 = arith.constant 0 : i32
    %c0_i32_1 = arith.constant 0 : i32
    %c0_i32_2 = arith.constant 0 : i32
    return %arg1, %c0_i32, %c0_i32_0, %c0_i32_1 : i32, i32, i32, i32
  }
  func.func @transform_3(%arg0: i32, %arg1: i32) -> (i32, i32, i32, i32) {
    %c0_i32 = arith.constant 0 : i32
    %c0_i32_0 = arith.constant 0 : i32
    %c0_i32_1 = arith.constant 0 : i32
    return %arg1, %c0_i32, %arg0, %c0_i32_0 : i32, i32, i32, i32
  }
  func.func @transform_4(%arg0: i32, %arg1: i32) -> (i32, i32, i32, i32) {
    %c0_i32 = arith.constant 0 : i32
    %c0_i32_0 = arith.constant 0 : i32
    %c0_i32_1 = arith.constant 0 : i32
    return %arg1, %c0_i32, %arg0, %c0_i32_0 : i32, i32, i32, i32
  }
}

</mosaic_0001>

<llo_original>
// kernel: tpu_custom_call.1
$region0: #{tpu_custom_call.1}
  #allocation0 [shape = 'u32[]', space=smem, size = 0x4, offset = 0x4, fixed_abs, tag = 'smem constant byte address 0x4 - core index']
  #allocation1 [shape = 'u32[144,128]{1,0:T(1,128)}', space=vmem, size = 0x12000, scoped, tag = 'internal scratch']
  %s0 = inlined_call_operand.hbm [shape: f32[2,4,16,16], index: 0, kind: input, shape index: {}]
  %s1 = inlined_call_operand.hbm [shape: f32[2,2,16,16], index: 1, kind: input, shape index: {}]
  %s2 = inlined_call_operand.hbm [shape: f32[2,2,16,16], index: 2, kind: input, shape index: {}]
  %s3 = inlined_call_operand.hbm [shape: f32[2,2,16,16], index: 3, kind: input, shape index: {}]
  %s4 = inlined_call_operand.hbm [shape: f32[2,4,16,16], index: 4, kind: output, shape index: {}]
  %s5 = sld [smem:[#allocation0]]
  $region65: #{tpu_custom_call.1} parent=0
    _
  %s7 = ssub.s32 1, %s5
  %s8 = scalar_select 0, %s7, %s5
  $region1: #{tpu_custom_call.1} parent=0
    #allocation2 [shape = 'u8[65536]{0}', space=vmem, size = 0x10000, scoped, tag = 'input window, operand 0, single buffered']
    #allocation3 [shape = 's32[2]{0}', space=sflag, size = 0x8, scoped, tag = 'scoped memory for tpu_custom_call.1']
    #allocation4 [shape = 's32[2]{0}', space=sflag, size = 0x8, scoped, tag = 'scoped memory for tpu_custom_call.1']
    #allocation5 [shape = 'u8[32768]{0}', space=vmem, size = 0x8000, scoped, tag = 'input window, operand 1']
    #allocation6 [shape = 's32[2]{0}', space=sflag, size = 0x8, scoped, tag = 'scoped memory for tpu_custom_call.1']
    #allocation7 [shape = 'u8[32768]{0}', space=vmem, size = 0x8000, scoped, tag = 'input window, operand 2']
    #allocation8 [shape = 'u8[32768]{0}', space=vmem, size = 0x8000, scoped, tag = 'input window, operand 3']
    #allocation9 [shape = 's32[2]{0}', space=sflag, size = 0x8, scoped, tag = 'scoped memory for tpu_custom_call.1']
    #allocation10 [shape = 'u8[65536]{0}', space=vmem, size = 0x10000, scoped, tag = 'output window, operand 0']
    %9 = vsyncpa [#allocation3], 0
    %10 = vsyncpa [#allocation6], 0
    %s11 = scalar_lea.sflag [#allocation6], 1
    %12 = vsyncpa %s11, 0
    %13 = vsyncpa [#allocation9], 0
    %s14 = scalar_lea.sflag [#allocation9], 1
    %15 = vsyncpa %s14, 0
    %16 = vsyncpa [#allocation4], 0
    %s17 = scalar_lea.sflag [#allocation4], 1
    %18 = vsyncpa %s17, 0
    loop: start=0, step=1, limit=4
    $region2: #{tpu_custom_call.1} parent=1 // loop_pre_header
      _
    $region3: #{tpu_custom_call.1} parent=1 // loop_header
      %s20 = sphi 0, %s24
      %p21 = scmp.ge.s32.totalorder %s20, 4
      %s27 = sphi 0, %s39
      %s28 = sphi 0, %s35
      %s29 = sphi 0, %s27
      %s30 = sphi 0, %s28
      %s31 = sphi 0, %s29
      %s32 = sphi 0, %s30
      %s42 = sphi 0, %s44
      %s45 = sphi 0, %s42
      %s46 = sphi 0, %s45
      %s62 = sphi 0, %s46
      %s70 = sphi 0, %s72
      %s73 = sphi 0, %s70
      %s74 = sphi 0, %s73
      %s90 = sphi 0, %s74
      %s96 = sphi 0, %s98
      %s99 = sphi 0, %s96
      %s100 = sphi 0, %s99
      %s116 = sphi 0, %s100
      %s124 = sphi 0, %s126
      %s127 = sphi 0, %s124
      %s128 = sphi 0, %s127
      %s144 = sphi 0, %s128
      %s152 = sphi 0, %s154
      %s155 = sphi 0, %s152
      %s156 = sphi 0, %s155
      %s172 = sphi 0, %s156
    $region4: #{tpu_custom_call.1} parent=1 // loop_header_branch
      %23 = sbr.rel (%p21) target = $region8
    $region5: #{tpu_custom_call.1} parent=1 // loop_body
      %s25 = ssub.s32 %s20, 1
      %s26 = ssub.s32 %s20, 2
      %s33 = sadd.s32 1, %s28
      %p34 = scmp.ge.s32.totalorder %s33, 2
      %s35 = scalar_select %p34, 0, %s33
      %s36 = sadd.s32 1, %s27
      %s37 = scalar_select %p34, %s36, %s27
      %p38 = scmp.ge.s32.totalorder %s37, 1
      %s39 = scalar_select %p38, 0, %s37
      %s40 = ssub.s32 %s27, %s39
      %p41 = scmp.eq.s32.totalorder %s40, 0
      %s43 = sadd.s32 %s42, 1
      %s44 = scalar_select %p41, %s42, %s43
      %p47 = pneg %p41
      %p48 = scmp.eq.s32.totalorder %s20, 1
      %p49 = por %p47, %p48
      %p50 = scmp.ne.s32.totalorder %s42, %s45
      %p51 = scmp.eq.s32.totalorder %s20, 0
      %p52 = por %p50, %p51
      %p53 = scmp.ne.s32.totalorder %s42, %s45
      %p54 = scmp.eq.s32.totalorder %s25, 1
      %p55 = por %p53, %p54
      %p56 = scmp.ne.s32.totalorder %s45, %s46
      %p57 = scmp.eq.s32.totalorder %s25, 0
      %p58 = por %p56, %p57
      %p59 = scmp.ne.s32.totalorder %s45, %s46
      %p60 = scmp.eq.s32.totalorder %s26, 1
      %p61 = por %p59, %p60
      %p63 = scmp.ne.s32.totalorder %s46, %s62
      %p64 = scmp.eq.s32.totalorder %s26, 0
      %p65 = por %p63, %p64
      %s66 = ssub.s32 %s28, %s35
      %s67 = ssub.s32 %s27, %s39
      %s68 = sor.u32 %s66, %s67
      %p69 = scmp.eq.s32.totalorder %s68, 0
      %s71 = sadd.s32 %s70, 1
      %s72 = scalar_select %p69, %s70, %s71
      %p75 = pneg %p69
      %p76 = scmp.eq.s32.totalorder %s20, 1
      %p77 = por %p75, %p76
      %p78 = scmp.ne.s32.totalorder %s70, %s73
      %p79 = scmp.eq.s32.totalorder %s20, 0
      %p80 = por %p78, %p79
      %p81 = scmp.ne.s32.totalorder %s70, %s73
      %p82 = scmp.eq.s32.totalorder %s25, 1
      %p83 = por %p81, %p82
      %p84 = scmp.ne.s32.totalorder %s73, %s74
      %p85 = scmp.eq.s32.totalorder %s25, 0
      %p86 = por %p84, %p85
      %p87 = scmp.ne.s32.totalorder %s73, %s74
      %p88 = scmp.eq.s32.totalorder %s26, 1
      %p89 = por %p87, %p88
      %p91 = scmp.ne.s32.totalorder %s74, %s90
      %p92 = scmp.eq.s32.totalorder %s26, 0
      %p93 = por %p91, %p92
      %s94 = ssub.s32 %s28, %s35
      %p95 = scmp.eq.s32.totalorder %s94, 0
      %s97 = sadd.s32 %s96, 1
      %s98 = scalar_select %p95, %s96, %s97
      %p101 = pneg %p95
      %p102 = scmp.eq.s32.totalorder %s20, 1
      %p103 = por %p101, %p102
      %p104 = scmp.ne.s32.totalorder %s96, %s99
      %p105 = scmp.eq.s32.totalorder %s20, 0
      %p106 = por %p104, %p105
      %p107 = scmp.ne.s32.totalorder %s96, %s99
      %p108 = scmp.eq.s32.totalorder %s25, 1
      %p109 = por %p107, %p108
      %p110 = scmp.ne.s32.totalorder %s99, %s100
      %p111 = scmp.eq.s32.totalorder %s25, 0
      %p112 = por %p110, %p111
      %p113 = scmp.ne.s32.totalorder %s99, %s100
      %p114 = scmp.eq.s32.totalorder %s26, 1
      %p115 = por %p113, %p114
      %p117 = scmp.ne.s32.totalorder %s100, %s116
      %p118 = scmp.eq.s32.totalorder %s26, 0
      %p119 = por %p117, %p118
      %s120 = ssub.s32 %s28, %s35
      %s121 = ssub.s32 %s27, %s39
      %s122 = sor.u32 %s120, %s121
      %p123 = scmp.eq.s32.totalorder %s122, 0
      %s125 = sadd.s32 %s124, 1
      %s126 = scalar_select %p123, %s124, %s125
      %p129 = pneg %p123
      %p130 = scmp.eq.s32.totalorder %s20, 1
      %p131 = por %p129, %p130
      %p132 = scmp.ne.s32.totalorder %s124, %s127
      %p133 = scmp.eq.s32.totalorder %s20, 0
      %p134 = por %p132, %p133
      %p135 = scmp.ne.s32.totalorder %s124, %s127
      %p136 = scmp.eq.s32.totalorder %s25, 1
      %p137 = por %p135, %p136
      %p138 = scmp.ne.s32.totalorder %s127, %s128
      %p139 = scmp.eq.s32.totalorder %s25, 0
      %p140 = por %p138, %p139
      %p141 = scmp.ne.s32.totalorder %s127, %s128
      %p142 = scmp.eq.s32.totalorder %s26, 1
      %p143 = por %p141, %p142
      %p145 = scmp.ne.s32.totalorder %s128, %s144
      %p146 = scmp.eq.s32.totalorder %s26, 0
      %p147 = por %p145, %p146
      %s148 = ssub.s32 %s28, %s35
      %s149 = ssub.s32 %s27, %s39
      %s150 = sor.u32 %s148, %s149
      %p151 = scmp.eq.s32.totalorder %s150, 0
      %s153 = sadd.s32 %s152, 1
      %s154 = scalar_select %p151, %s152, %s153
      %p157 = pneg %p151
      %p158 = scmp.eq.s32.totalorder %s20, 1
      %p159 = por %p157, %p158
      %p160 = scmp.ne.s32.totalorder %s152, %s155
      %p161 = scmp.eq.s32.totalorder %s20, 0
      %p162 = por %p160, %p161
      %p163 = scmp.ne.s32.totalorder %s152, %s155
      %p164 = scmp.eq.s32.totalorder %s25, 1
      %p165 = por %p163, %p164
      %p166 = scmp.ne.s32.totalorder %s155, %s156
      %p167 = scmp.eq.s32.totalorder %s25, 0
      %p168 = por %p166, %p167
      %p169 = scmp.ne.s32.totalorder %s155, %s156
      %p170 = scmp.eq.s32.totalorder %s26, 1
      %p171 = por %p169, %p170
      %p173 = scmp.ne.s32.totalorder %s156, %s172
      %p174 = scmp.eq.s32.totalorder %s26, 0
      %p175 = por %p173, %p174
      %p176 = scmp.le.s32.totalorder 1, %s20
      %p177 = scmp.lt.s32.totalorder %s20, 3
      %p178 = pnand %p176, %p177
      %p179 = pneg %p178
      // Predicated region
      $region9: #{tpu_custom_call.1} parent=5 // pred_check
        _
      $region10: #{tpu_custom_call.1} parent=5 // pred_check_branch
        %181 = sbr.rel (%p178) target = $region12
      $region11: #{tpu_custom_call.1} parent=5 // pred_region
        %s182 = ssub.s32 %s20, 1
        // Predicated region
        $region13: #{tpu_custom_call.1} parent=11 // pred_check
          %p183 = pneg %p58
        $region14: #{tpu_custom_call.1} parent=11 // pred_check_branch
          %185 = sbr.rel (%p183) target = $region16
        $region15: #{tpu_custom_call.1} parent=11 // pred_region
          %s186 = smul.u32 2, %s29
          %s188 = ssub.s32 2048, 2048
          %189 = vsyncadd [#allocation3], %s188
          %s190 = smul.addr %s186, 128
          %s191 = scalar_lea.hbm %s0, %s190
          %s192 = sshll.u32 [#allocation2], 4
          %s193 = int_to_ptr.vmem [resolvable:$true] %s192
          %198 = dma.hbm_to_vmem [thread:$0]  %s191, 2048, %s193, [#allocation3], 128, 128, 8
        $region16: #{tpu_custom_call.1} parent=11 // pred_fallthru
          _
      $region12: #{tpu_custom_call.1} parent=5 // pred_fallthru
        _
      %p199 = scmp.lt.s32.totalorder %s20, 2
      // Predicated region
      $region17: #{tpu_custom_call.1} parent=5 // pred_check
        %p200 = pneg %p199
      $region18: #{tpu_custom_call.1} parent=5 // pred_check_branch
        %202 = sbr.rel (%p200) target = $region20
      $region19: #{tpu_custom_call.1} parent=5 // pred_region
        // Predicated region
        $region21: #{tpu_custom_call.1} parent=19 // pred_check
          %p203 = pneg %p80
        $region22: #{tpu_custom_call.1} parent=19 // pred_check_branch
          %205 = sbr.rel (%p203) target = $region24
        $region23: #{tpu_custom_call.1} parent=19 // pred_region
          %s206 = sand.u32 %s20, 1
          %s207 = scalar_lea.sflag [#allocation6], %s206
          %s208 = sand.u32 %s70, 1
          %s209 = smul.addr %s208, 32
          %s210 = scalar_lea.vmem [#allocation5], %s209
          %s211 = smul.u32 2, %s27
          %s213 = ssub.s32 512, 512
          %214 = vsyncadd %s207, %s213
          %s215 = smul.addr %s28, 4
          %s216 = sadd.s32 %s211, %s215
          %s217 = smul.addr %s216, 128
          %s218 = scalar_lea.hbm %s1, %s217
          %s219 = sshll.u32 %s210, 4
          %s220 = int_to_ptr.vmem [resolvable:$true] %s219
          %225 = dma.hbm_to_vmem [thread:$0]  %s218, 512, %s220, %s207, 128, 128, 8
        $region24: #{tpu_custom_call.1} parent=19 // pred_fallthru
          _
        // Predicated region
        $region25: #{tpu_custom_call.1} parent=19 // pred_check
          %p226 = pneg %p106
        $region26: #{tpu_custom_call.1} parent=19 // pred_check_branch
          %228 = sbr.rel (%p226) target = $region28
        $region27: #{tpu_custom_call.1} parent=19 // pred_region
          %s229 = sand.u32 %s20, 1
          %s230 = scalar_lea.sflag [#allocation6], %s229
          %s231 = sand.u32 %s96, 1
          %s232 = smul.addr %s231, 32
          %s233 = scalar_lea.vmem [#allocation7], %s232
          %s235 = ssub.s32 512, 512
          %236 = vsyncadd %s230, %s235
          %s237 = smul.addr %s28, 4
          %s238 = smul.addr %s237, 128
          %s239 = scalar_lea.hbm %s2, %s238
          %s240 = sshll.u32 %s233, 4
          %s241 = int_to_ptr.vmem [resolvable:$true] %s240
          %246 = dma.hbm_to_vmem [thread:$0]  %s239, 512, %s241, %s230, 128, 128, 8
        $region28: #{tpu_custom_call.1} parent=19 // pred_fallthru
          _
        // Predicated region
        $region29: #{tpu_custom_call.1} parent=19 // pred_check
          %p247 = pneg %p134
        $region30: #{tpu_custom_call.1} parent=19 // pred_check_branch
          %249 = sbr.rel (%p247) target = $region32
        $region31: #{tpu_custom_call.1} parent=19 // pred_region
          %s250 = sand.u32 %s124, 1
          %s251 = scalar_lea.sflag [#allocation9], %s250
          %s252 = sand.u32 %s124, 1
          %s253 = smul.addr %s252, 32
          %s254 = scalar_lea.vmem [#allocation8], %s253
          %s255 = smul.u32 2, %s27
          %s257 = ssub.s32 512, 512
          %258 = vsyncadd %s251, %s257
          %s259 = smul.addr %s28, 4
          %s260 = sadd.s32 %s255, %s259
          %s261 = smul.addr %s260, 128
          %s262 = scalar_lea.hbm %s3, %s261
          %s263 = sshll.u32 %s254, 4
          %s264 = int_to_ptr.vmem [resolvable:$true] %s263
          %269 = dma.hbm_to_vmem [thread:$0]  %s262, 512, %s264, %s251, 128, 128, 8
        $region32: #{tpu_custom_call.1} parent=19 // pred_fallthru
          _
      $region20: #{tpu_custom_call.1} parent=5 // pred_fallthru
        _
      %p270 = scmp.le.s32.totalorder 1, %s20
      %p271 = scmp.lt.s32.totalorder %s20, 3
      %p272 = pnand %p270, %p271
      %p273 = pneg %p272
      // Predicated region
      $region33: #{tpu_custom_call.1} parent=5 // pred_check
        _
      $region34: #{tpu_custom_call.1} parent=5 // pred_check_branch
        %275 = sbr.rel (%p272) target = $region36
      $region35: #{tpu_custom_call.1} parent=5 // pred_region
        %s276 = ssub.s32 %s20, 1
        // Predicated region
        $region37: #{tpu_custom_call.1} parent=35 // pred_check
          %p277 = pneg %p58
        $region38: #{tpu_custom_call.1} parent=35 // pred_check_branch
          %279 = sbr.rel (%p277) target = $region40
        $region39: #{tpu_custom_call.1} parent=35 // pred_region
          %280 = dma.done [#allocation3], 2048
        $region40: #{tpu_custom_call.1} parent=35 // pred_fallthru
          _
        %s281 = sand.u32 %s25, 1
        %s282 = scalar_lea.sflag [#allocation6], %s281
        %s283 = sand.u32 %s73, 1
        %s284 = smul.addr %s283, 32
        %s285 = scalar_lea.vmem [#allocation5], %s284
        // Predicated region
        $region41: #{tpu_custom_call.1} parent=35 // pred_check
          %p286 = pneg %p86
        $region42: #{tpu_custom_call.1} parent=35 // pred_check_branch
          %288 = sbr.rel (%p286) target = $region44
        $region43: #{tpu_custom_call.1} parent=35 // pred_region
          %289 = dma.done %s282, 512
        $region44: #{tpu_custom_call.1} parent=35 // pred_fallthru
          _
        %s290 = sand.u32 %s25, 1
        %s291 = scalar_lea.sflag [#allocation6], %s290
        %s292 = sand.u32 %s99, 1
        %s293 = smul.addr %s292, 32
        %s294 = scalar_lea.vmem [#allocation7], %s293
        // Predicated region
        $region45: #{tpu_custom_call.1} parent=35 // pred_check
          %p295 = pneg %p112
        $region46: #{tpu_custom_call.1} parent=35 // pred_check_branch
          %297 = sbr.rel (%p295) target = $region48
        $region47: #{tpu_custom_call.1} parent=35 // pred_region
          %298 = dma.done %s291, 512
        $region48: #{tpu_custom_call.1} parent=35 // pred_fallthru
          _
        %s299 = sand.u32 %s127, 1
        %s300 = scalar_lea.sflag [#allocation9], %s299
        %s301 = sand.u32 %s127, 1
        %s302 = smul.addr %s301, 32
        %s303 = scalar_lea.vmem [#allocation8], %s302
        // Predicated region
        $region49: #{tpu_custom_call.1} parent=35 // pred_check
          %p304 = pneg %p140
        $region50: #{tpu_custom_call.1} parent=35 // pred_check_branch
          %306 = sbr.rel (%p304) target = $region52
        $region51: #{tpu_custom_call.1} parent=35 // pred_region
          %307 = dma.done %s300, 512
        $region52: #{tpu_custom_call.1} parent=35 // pred_fallthru
          _
        %p308 = pneg %p58
        %p309 = pneg %p55
        %s310 = sand.u32 %s25, 1
        %s311 = scalar_lea.sflag [#allocation6], %s310
        %s312 = sand.u32 %s73, 1
        %s313 = smul.addr %s312, 32
        %s314 = scalar_lea.vmem [#allocation5], %s313
        %p315 = pneg %p86
        %p316 = pneg %p83
        %s317 = sand.u32 %s25, 1
        %s318 = scalar_lea.sflag [#allocation6], %s317
        %s319 = sand.u32 %s99, 1
        %s320 = smul.addr %s319, 32
        %s321 = scalar_lea.vmem [#allocation7], %s320
        %p322 = pneg %p112
        %p323 = pneg %p109
        %s324 = sand.u32 %s127, 1
        %s325 = scalar_lea.sflag [#allocation9], %s324
        %s326 = sand.u32 %s127, 1
        %s327 = smul.addr %s326, 32
        %s328 = scalar_lea.vmem [#allocation8], %s327
        %p329 = pneg %p140
        %p330 = pneg %p137
        %p331 = pneg %p168
        %p332 = pneg %p165
        %s333 = sand.u32 %s155, 1
        %s334 = scalar_lea.sflag [#allocation4], %s333
        %s335 = sand.u32 %s155, 1
        %s336 = smul.addr %s335, 64
        %s337 = scalar_lea.vmem [#allocation10], %s336
        %s338 = smul.u32 2, %s29
        %s339 = smul.u32 2, %s29
        %s340 = smul.u32 2, %s29
        %s341 = smul.u32 2, %s29
        %v342 = vld [vmem:[%s285] sm:$0xff]
        %v343 = vld [vmem:[%s285 + $0x8] sm:$0xff]
        %v344 = vld [vmem:[%s294] sm:$0xff]
        %v345 = vld [vmem:[%s294 + $0x8] sm:$0xff]
        %vm346 = vcmask 130048
        %v348 = vsel %vm346, %v342, 0
        %v351 = vsel %vm346, %v343, 0
        %353 = vmatprep.subr.mxu0 0.0
        %354 = vmatpush1.msra.mxu0 0.0
        %355 = vmatprep.subr.mxu0 0.0
        %356 = vmatpush1.msra.mxu0 0.0
        %357 = vmatprep.subr.mxu0 0.0
        %358 = vmatpush1.msra.mxu0 0.0
        %359 = vmatprep.subr.mxu0 0.0
        %360 = vmatpush1.msra.mxu0 0.0
        %361 = vmatprep.subr.mxu0 0.0
        %362 = vmatpush1.msra.mxu0 0.0
        %363 = vmatprep.subr.mxu0 0.0
        %364 = vmatpush1.msra.mxu0 0.0
        %365 = vmatprep.subr.mxu0 0.0
        %366 = vmatpush1.msra.mxu0 0.0
        %367 = vmatprep.subr.mxu0 0.0
        %368 = vmatpush1.msra.mxu0 0.0
        %369 = vmatprep.subr.mxu0 0.0
        %370 = vmatpush1.msra.mxu0 0.0
        %371 = vmatprep.subr.mxu0 0.0
        %372 = vmatpush1.msra.mxu0 0.0
        %373 = vmatprep.subr.mxu0 0.0
        %374 = vmatpush1.msra.mxu0 0.0
        %375 = vmatprep.subr.mxu0 0.0
        %376 = vmatpush1.msra.mxu0 0.0
        %377 = vmatprep.subr.mxu0 0.0
        %378 = vmatpush1.msra.mxu0 0.0
        %379 = vmatprep.subr.mxu0 0.0
        %380 = vmatpush1.msra.mxu0 0.0
        %381 = vmatprep.subr.mxu0 0.0
        %382 = vmatpush1.msra.mxu0 %v345
        %383 = vmatprep.subr.mxu0 0.0
        %384 = vmatpush1.msra.mxu0 %v344
        %385 = vmatprep.subr.mxu0 0.0
        %386 = vmatpush2.msra.mxu0 0.0
        %387 = vmatprep.subr.mxu0 0.0
        %388 = vmatpush2.msra.mxu0 0.0
        %389 = vmatprep.subr.mxu0 0.0
        %390 = vmatpush2.msra.mxu0 0.0
        %391 = vmatprep.subr.mxu0 0.0
        %392 = vmatpush2.msra.mxu0 0.0
        %393 = vmatprep.subr.mxu0 0.0
        %394 = vmatpush2.msra.mxu0 0.0
        %395 = vmatprep.subr.mxu0 0.0
        %396 = vmatpush2.msra.mxu0 0.0
        %397 = vmatprep.subr.mxu0 0.0
        %398 = vmatpush2.msra.mxu0 0.0
        %399 = vmatprep.subr.mxu0 0.0
        %400 = vmatpush2.msra.mxu0 0.0
        %401 = vmatprep.subr.mxu0 0.0
        %402 = vmatpush2.msra.mxu0 0.0
        %403 = vmatprep.subr.mxu0 0.0
        %404 = vmatpush2.msra.mxu0 0.0
        %405 = vmatprep.subr.mxu0 0.0
        %406 = vmatpush2.msra.mxu0 0.0
        %407 = vmatprep.subr.mxu0 0.0
        %408 = vmatpush2.msra.mxu0 0.0
        %409 = vmatprep.subr.mxu0 0.0
        %410 = vmatpush2.msra.mxu0 0.0
        %411 = vmatprep.subr.mxu0 0.0
        %412 = vmatpush2.msra.mxu0 0.0
        %413 = vmatprep.subr.mxu0 0.0
        %414 = vmatpush2.msra.mxu0 0.0
        %415 = vmatprep.subr.mxu0 0.0
        %416 = vmatpush2.msra.mxu0 0.0
        %417 = vmatprep.mubr.f32.mxu0 0.0
        %418 = vmatmul.mubr.f32.gmra.mxu0 %v348
        %v419 = vpop.f32.mrf.mxu0
        %v420 = vadd.f32 0.0, %v419
        %v421 = vpop.f32.mrf.mxu0
        %422 = vmatprep.mubr.f32.mxu0 0.0
        %423 = vmatmul.mubr.f32.gmra.mxu0 %v351
        %v424 = vpop.f32.mrf.mxu0
        %v425 = vadd.f32 0.0, %v424
        %v426 = vpop.f32.mrf.mxu0
        %427 = vdwg.mxu0
        %v428 = vmul.f32 %v420, 0.5
        %v429 = vmul.f32 %v425, 0.5
        %v430 = vld [vmem:[%s303] sm:$0xff]
        %v431 = vld [vmem:[%s303 + $0x8] sm:$0xff]
        %v432 = vadd.f32 %v428, %v430
        %v433 = vadd.f32 %v429, %v431
        %s434 = scalar_lea.vmem %s285, 16 [#allocation5]
        %v435 = vld [vmem:[%s434] sm:$0xff]
        %v436 = vld [vmem:[%s434 + $0x8] sm:$0xff]
        %s437 = scalar_lea.vmem %s294, 16 [#allocation7]
        %v438 = vld [vmem:[%s437] sm:$0xff]
        %v439 = vld [vmem:[%s437 + $0x8] sm:$0xff]
        %v441 = vsel %vm346, %v435, 0
        %v444 = vsel %vm346, %v436, 0
        %446 = vmatprep.subr.mxu0 0.0
        %447 = vmatpush1.msra.mxu0 0.0
        %448 = vmatprep.subr.mxu0 0.0
        %449 = vmatpush1.msra.mxu0 0.0
        %450 = vmatprep.subr.mxu0 0.0
        %451 = vmatpush1.msra.mxu0 0.0
        %452 = vmatprep.subr.mxu0 0.0
        %453 = vmatpush1.msra.mxu0 0.0
        %454 = vmatprep.subr.mxu0 0.0
        %455 = vmatpush1.msra.mxu0 0.0
        %456 = vmatprep.subr.mxu0 0.0
        %457 = vmatpush1.msra.mxu0 0.0
        %458 = vmatprep.subr.mxu0 0.0
        %459 = vmatpush1.msra.mxu0 0.0
        %460 = vmatprep.subr.mxu0 0.0
        %461 = vmatpush1.msra.mxu0 0.0
        %462 = vmatprep.subr.mxu0 0.0
        %463 = vmatpush1.msra.mxu0 0.0
        %464 = vmatprep.subr.mxu0 0.0
        %465 = vmatpush1.msra.mxu0 0.0
        %466 = vmatprep.subr.mxu0 0.0
        %467 = vmatpush1.msra.mxu0 0.0
        %468 = vmatprep.subr.mxu0 0.0
        %469 = vmatpush1.msra.mxu0 0.0
        %470 = vmatprep.subr.mxu0 0.0
        %471 = vmatpush1.msra.mxu0 0.0
        %472 = vmatprep.subr.mxu0 0.0
        %473 = vmatpush1.msra.mxu0 0.0
        %474 = vmatprep.subr.mxu0 0.0
        %475 = vmatpush1.msra.mxu0 %v439
        %476 = vmatprep.subr.mxu0 0.0
        %477 = vmatpush1.msra.mxu0 %v438
        %478 = vmatprep.subr.mxu0 0.0
        %479 = vmatpush2.msra.mxu0 0.0
        %480 = vmatprep.subr.mxu0 0.0
        %481 = vmatpush2.msra.mxu0 0.0
        %482 = vmatprep.subr.mxu0 0.0
        %483 = vmatpush2.msra.mxu0 0.0
        %484 = vmatprep.subr.mxu0 0.0
        %485 = vmatpush2.msra.mxu0 0.0
        %486 = vmatprep.subr.mxu0 0.0
        %487 = vmatpush2.msra.mxu0 0.0
        %488 = vmatprep.subr.mxu0 0.0
        %489 = vmatpush2.msra.mxu0 0.0
        %490 = vmatprep.subr.mxu0 0.0
        %491 = vmatpush2.msra.mxu0 0.0
        %492 = vmatprep.subr.mxu0 0.0
        %493 = vmatpush2.msra.mxu0 0.0
        %494 = vmatprep.subr.mxu0 0.0
        %495 = vmatpush2.msra.mxu0 0.0
        %496 = vmatprep.subr.mxu0 0.0
        %497 = vmatpush2.msra.mxu0 0.0
        %498 = vmatprep.subr.mxu0 0.0
        %499 = vmatpush2.msra.mxu0 0.0
        %500 = vmatprep.subr.mxu0 0.0
        %501 = vmatpush2.msra.mxu0 0.0
        %502 = vmatprep.subr.mxu0 0.0
        %503 = vmatpush2.msra.mxu0 0.0
        %504 = vmatprep.subr.mxu0 0.0
        %505 = vmatpush2.msra.mxu0 0.0
        %506 = vmatprep.subr.mxu0 0.0
        %507 = vmatpush2.msra.mxu0 0.0
        %508 = vmatprep.subr.mxu0 0.0
        %509 = vmatpush2.msra.mxu0 0.0
        %510 = vmatprep.mubr.f32.mxu0 0.0
        %511 = vmatmul.mubr.f32.gmra.mxu0 %v441
        %v512 = vpop.f32.mrf.mxu0
        %v513 = vadd.f32 0.0, %v512
        %v514 = vpop.f32.mrf.mxu0
        %515 = vmatprep.mubr.f32.mxu0 0.0
        %516 = vmatmul.mubr.f32.gmra.mxu0 %v444
        %v517 = vpop.f32.mrf.mxu0
        %v518 = vadd.f32 0.0, %v517
        %v519 = vpop.f32.mrf.mxu0
        %520 = vdwg.mxu0
        %v521 = vmul.f32 %v513, 0.5
        %v522 = vmul.f32 %v518, 0.5
        %s523 = scalar_lea.vmem %s303, 16 [#allocation8]
        %v524 = vld [vmem:[%s523] sm:$0xff]
        %v525 = vld [vmem:[%s523 + $0x8] sm:$0xff]
        %v526 = vadd.f32 %v521, %v524
        %v527 = vadd.f32 %v522, %v525
        %v528 = vld [vmem:[#allocation2] sm:$0xff]
        %v529 = vld [vmem:[#allocation2 + $0x8] sm:$0xff]
        %v530 = vmul.f32 %v432, %v528
        %v531 = vmul.f32 %v433, %v529
        %s532 = scalar_lea.vmem [#allocation2], 64
        %v533 = vld [vmem:[%s532] sm:$0xff]
        %v534 = vld [vmem:[%s532 + $0x8] sm:$0xff]
        %v535 = vmul.f32 %v526, %v533
        %v536 = vmul.f32 %v527, %v534
        %v537 = vadd.f32 %v530, %v535
        %v538 = vadd.f32 %v531, %v536
        %539 = vst.msk [vmem:[%s337] sm:$0xff] %vm346, %v537
        %540 = vst.msk [vmem:[%s337 + $0x8] sm:$0xff] %vm346, %v538
        %s541 = scalar_lea.vmem [#allocation2], 16
        %v542 = vld [vmem:[%s541] sm:$0xff]
        %v543 = vld [vmem:[%s541 + $0x8] sm:$0xff]
        %v544 = vmul.f32 %v432, %v542
        %v545 = vmul.f32 %v433, %v543
        %s546 = scalar_lea.vmem [#allocation2], 80
        %v547 = vld [vmem:[%s546] sm:$0xff]
        %v548 = vld [vmem:[%s546 + $0x8] sm:$0xff]
        %v549 = vmul.f32 %v526, %v547
        %v550 = vmul.f32 %v527, %v548
        %v551 = vadd.f32 %v544, %v549
        %v552 = vadd.f32 %v545, %v550
        %s553 = scalar_lea.vmem %s337, 16 [#allocation10]
        %554 = vst.msk [vmem:[%s553] sm:$0xff] %vm346, %v551
        %555 = vst.msk [vmem:[%s553 + $0x8] sm:$0xff] %vm346, %v552
        %s556 = scalar_lea.vmem [#allocation2], 32
        %v557 = vld [vmem:[%s556] sm:$0xff]
        %v558 = vld [vmem:[%s556 + $0x8] sm:$0xff]
        %v559 = vmul.f32 %v432, %v557
        %v560 = vmul.f32 %v433, %v558
        %s561 = scalar_lea.vmem [#allocation2], 96
        %v562 = vld [vmem:[%s561] sm:$0xff]
        %v563 = vld [vmem:[%s561 + $0x8] sm:$0xff]
        %v564 = vmul.f32 %v526, %v562
        %v565 = vmul.f32 %v527, %v563
        %v566 = vadd.f32 %v559, %v564
        %v567 = vadd.f32 %v560, %v565
        %s568 = scalar_lea.vmem %s337, 32 [#allocation10]
        %569 = vst.msk [vmem:[%s568] sm:$0xff] %vm346, %v566
        %570 = vst.msk [vmem:[%s568 + $0x8] sm:$0xff] %vm346, %v567
        %s571 = scalar_lea.vmem [#allocation2], 48
        %v572 = vld [vmem:[%s571] sm:$0xff]
        %v573 = vld [vmem:[%s571 + $0x8] sm:$0xff]
        %v574 = vmul.f32 %v432, %v572
        %v575 = vmul.f32 %v433, %v573
        %s576 = scalar_lea.vmem [#allocation2], 112
        %v577 = vld [vmem:[%s576] sm:$0xff]
        %v578 = vld [vmem:[%s576 + $0x8] sm:$0xff]
        %v579 = vmul.f32 %v526, %v577
        %v580 = vmul.f32 %v527, %v578
        %v581 = vadd.f32 %v574, %v579
        %v582 = vadd.f32 %v575, %v580
        %s583 = scalar_lea.vmem %s337, 48 [#allocation10]
        %584 = vst.msk [vmem:[%s583] sm:$0xff] %vm346, %v581
        %585 = vst.msk [vmem:[%s583 + $0x8] sm:$0xff] %vm346, %v582
        %s586 = sand.u32 %s155, 1
        %s587 = scalar_lea.sflag [#allocation4], %s586
        %s588 = sand.u32 %s155, 1
        %s589 = smul.addr %s588, 64
        %s590 = scalar_lea.vmem [#allocation10], %s589
        // Predicated region
        $region53: #{tpu_custom_call.1} parent=35 // pred_check
          %p591 = pneg %p165
        $region54: #{tpu_custom_call.1} parent=35 // pred_check_branch
          %593 = sbr.rel (%p591) target = $region56
        $region55: #{tpu_custom_call.1} parent=35 // pred_region
          %s594 = smul.u32 2, %s29
          %s596 = ssub.s32 1024, 1024
          %597 = vsyncadd %s587, %s596
          %s598 = smul.addr %s30, 8
          %s599 = sadd.s32 %s594, %s598
          %s600 = smul.addr %s599, 128
          %s601 = scalar_lea.hbm %s4, %s600
          %s602 = sshll.u32 %s590, 4
          %s603 = int_to_ptr.vmem [resolvable:$true] %s602
          %608 = dma.vmem_to_hbm [thread:$0]  %s603, 1024, %s601, %s587, 128, 128, 8
        $region56: #{tpu_custom_call.1} parent=35 // pred_fallthru
          _
      $region36: #{tpu_custom_call.1} parent=5 // pred_fallthru
        _
      %p609 = scmp.le.s32.totalorder 2, %s20
      // Predicated region
      $region57: #{tpu_custom_call.1} parent=5 // pred_check
        %p610 = pneg %p609
      $region58: #{tpu_custom_call.1} parent=5 // pred_check_branch
        %612 = sbr.rel (%p610) target = $region60
      $region59: #{tpu_custom_call.1} parent=5 // pred_region
        %s613 = ssub.s32 %s20, 2
        // Predicated region
        $region61: #{tpu_custom_call.1} parent=59 // pred_check
          %p614 = pneg %p171
        $region62: #{tpu_custom_call.1} parent=59 // pred_check_branch
          %616 = sbr.rel (%p614) target = $region64
        $region63: #{tpu_custom_call.1} parent=59 // pred_region
          %s617 = sand.u32 %s156, 1
          %s618 = scalar_lea.sflag [#allocation4], %s617
          %s619 = sand.u32 %s156, 1
          %s620 = smul.addr %s619, 64
          %s621 = scalar_lea.vmem [#allocation10], %s620
          %622 = dma.done %s618, 1024
        $region64: #{tpu_custom_call.1} parent=59 // pred_fallthru
          _
      $region60: #{tpu_custom_call.1} parent=5 // pred_fallthru
        _
    $region6: #{tpu_custom_call.1} parent=1 // loop_footer
      %s24 = sadd.s32 1, %s20
    $region7: #{tpu_custom_call.1} parent=1 // loop_footer_branch
      %19 = sbr.rel target = $region3
    $region8: #{tpu_custom_call.1} parent=1 // loop_exit
      _
    %623 = vsyncpa [#allocation3], 1
    %s624 = scalar_lea.sflag [#allocation3], 1
    %625 = vsyncpa %s624, 1
    %626 = vsyncpa [#allocation6], 1
    %s627 = scalar_lea.sflag [#allocation6], 1
    %628 = vsyncpa %s627, 1
    %629 = vsyncpa [#allocation9], 1
    %s630 = scalar_lea.sflag [#allocation9], 1
    %631 = vsyncpa %s630, 1
    %632 = vsyncpa [#allocation4], 1
    %s633 = scalar_lea.sflag [#allocation4], 1
    %634 = vsyncpa %s633, 1

// kernel: tpu_custom_call.1
$region0: #{tpu_custom_call.1}
  #allocation0 [shape = 'u32[]', space=smem, size = 0x4, offset = 0x4, fixed_abs, tag = 'smem constant byte address 0x4 - core index']
  #allocation1 [shape = 'u32[144,128]{1,0:T(1,128)}', space=vmem, size = 0x12000, scoped, tag = 'internal scratch']
  %s0 = inlined_call_operand.hbm [shape: f32[2,4,16,16], index: 0, kind: input, shape index: {}]
  %s1 = inlined_call_operand.hbm [shape: f32[2,2,16,16], index: 1, kind: input, shape index: {}]
  %s2 = inlined_call_operand.hbm [shape: f32[2,2,16,16], index: 2, kind: input, shape index: {}]
  %s3 = inlined_call_operand.hbm [shape: f32[2,2,16,16], index: 3, kind: input, shape index: {}]
  %s4 = inlined_call_operand.hbm [shape: f32[2,4,16,16], index: 4, kind: output, shape index: {}]
  %s5 = sld [smem:[#allocation0]]
  $region65: #{tpu_custom_call.1} parent=0
    _
  %s7 = ssub.s32 1, %s5
  %s8 = scalar_select 0, %s7, %s5
  $region1: #{tpu_custom_call.1} parent=0
    #allocation2 [shape = 'u8[65536]{0}', space=vmem, size = 0x10000, scoped, tag = 'input window, operand 0, single buffered']
    #allocation3 [shape = 's32[2]{0}', space=sflag, size = 0x8, scoped, tag = 'scoped memory for tpu_custom_call.1']
    #allocation4 [shape = 's32[2]{0}', space=sflag, size = 0x8, scoped, tag = 'scoped memory for tpu_custom_call.1']
    #allocation5 [shape = 'u8[32768]{0}', space=vmem, size = 0x8000, scoped, tag = 'input window, operand 1']
    #allocation6 [shape = 's32[2]{0}', space=sflag, size = 0x8, scoped, tag = 'scoped memory for tpu_custom_call.1']
    #allocation7 [shape = 'u8[32768]{0}', space=vmem, size = 0x8000, scoped, tag = 'input window, operand 2']
    #allocation8 [shape = 'u8[32768]{0}', space=vmem, size = 0x8000, scoped, tag = 'input window, operand 3']
    #allocation9 [shape = 's32[2]{0}', space=sflag, size = 0x8, scoped, tag = 'scoped memory for tpu_custom_call.1']
    #allocation10 [shape = 'u8[65536]{0}', space=vmem, size = 0x10000, scoped, tag = 'output window, operand 0']
    %9 = vsyncpa [#allocation3], 0
    %10 = vsyncpa [#allocation6], 0
    %s11 = scalar_lea.sflag [#allocation6], 1
    %12 = vsyncpa %s11, 0
    %13 = vsyncpa [#allocation9], 0
    %s14 = scalar_lea.sflag [#allocation9], 1
    %15 = vsyncpa %s14, 0
    %16 = vsyncpa [#allocation4], 0
    %s17 = scalar_lea.sflag [#allocation4], 1
    %18 = vsyncpa %s17, 0
    loop: start=0, step=1, limit=4
    $region2: #{tpu_custom_call.1} parent=1 // loop_pre_header
      _
    $region3: #{tpu_custom_call.1} parent=1 // loop_header
      %s20 = sphi 0, %s24
      %p21 = scmp.ge.s32.totalorder %s20, 4
      %s27 = sphi 0, %s39
      %s28 = sphi 0, %s35
      %s29 = sphi 0, %s27
      %s30 = sphi 0, %s28
      %s31 = sphi 0, %s29
      %s32 = sphi 0, %s30
      %s42 = sphi 0, %s44
      %s45 = sphi 0, %s42
      %s46 = sphi 0, %s45
      %s62 = sphi 0, %s46
      %s70 = sphi 0, %s72
      %s73 = sphi 0, %s70
      %s74 = sphi 0, %s73
      %s90 = sphi 0, %s74
      %s96 = sphi 0, %s98
      %s99 = sphi 0, %s96
      %s100 = sphi 0, %s99
      %s116 = sphi 0, %s100
      %s124 = sphi 0, %s126
      %s127 = sphi 0, %s124
      %s128 = sphi 0, %s127
      %s144 = sphi 0, %s128
      %s152 = sphi 0, %s154
      %s155 = sphi 0, %s152
      %s156 = sphi 0, %s155
      %s172 = sphi 0, %s156
    $region4: #{tpu_custom_call.1} parent=1 // loop_header_branch
      %23 = sbr.rel (%p21) target = $region8
    $region5: #{tpu_custom_call.1} parent=1 // loop_body
      %s25 = ssub.s32 %s20, 1
      %s26 = ssub.s32 %s20, 2
      %s33 = sadd.s32 1, %s28
      %p34 = scmp.ge.s32.totalorder %s33, 2
      %s35 = scalar_select %p34, 0, %s33
      %s36 = sadd.s32 1, %s27
      %s37 = scalar_select %p34, %s36, %s27
      %p38 = scmp.ge.s32.totalorder %s37, 1
      %s39 = scalar_select %p38, 0, %s37
      %s40 = ssub.s32 %s27, %s39
      %p41 = scmp.eq.s32.totalorder %s40, 0
      %s43 = sadd.s32 %s42, 1
      %s44 = scalar_select %p41, %s42, %s43
      %p47 = pneg %p41
      %p48 = scmp.eq.s32.totalorder %s20, 1
      %p49 = por %p47, %p48
      %p50 = scmp.ne.s32.totalorder %s42, %s45
      %p51 = scmp.eq.s32.totalorder %s20, 0
      %p52 = por %p50, %p51
      %p53 = scmp.ne.s32.totalorder %s42, %s45
      %p54 = scmp.eq.s32.totalorder %s25, 1
      %p55 = por %p53, %p54
      %p56 = scmp.ne.s32.totalorder %s45, %s46
      %p57 = scmp.eq.s32.totalorder %s25, 0
      %p58 = por %p56, %p57
      %p59 = scmp.ne.s32.totalorder %s45, %s46
      %p60 = scmp.eq.s32.totalorder %s26, 1
      %p61 = por %p59, %p60
      %p63 = scmp.ne.s32.totalorder %s46, %s62
      %p64 = scmp.eq.s32.totalorder %s26, 0
      %p65 = por %p63, %p64
      %s66 = ssub.s32 %s28, %s35
      %s67 = ssub.s32 %s27, %s39
      %s68 = sor.u32 %s66, %s67
      %p69 = scmp.eq.s32.totalorder %s68, 0
      %s71 = sadd.s32 %s70, 1
      %s72 = scalar_select %p69, %s70, %s71
      %p75 = pneg %p69
      %p76 = scmp.eq.s32.totalorder %s20, 1
      %p77 = por %p75, %p76
      %p78 = scmp.ne.s32.totalorder %s70, %s73
      %p79 = scmp.eq.s32.totalorder %s20, 0
      %p80 = por %p78, %p79
      %p81 = scmp.ne.s32.totalorder %s70, %s73
      %p82 = scmp.eq.s32.totalorder %s25, 1
      %p83 = por %p81, %p82
      %p84 = scmp.ne.s32.totalorder %s73, %s74
      %p85 = scmp.eq.s32.totalorder %s25, 0
      %p86 = por %p84, %p85
      %p87 = scmp.ne.s32.totalorder %s73, %s74
      %p88 = scmp.eq.s32.totalorder %s26, 1
      %p89 = por %p87, %p88
      %p91 = scmp.ne.s32.totalorder %s74, %s90
      %p92 = scmp.eq.s32.totalorder %s26, 0
      %p93 = por %p91, %p92
      %s94 = ssub.s32 %s28, %s35
      %p95 = scmp.eq.s32.totalorder %s94, 0
      %s97 = sadd.s32 %s96, 1
      %s98 = scalar_select %p95, %s96, %s97
      %p101 = pneg %p95
      %p102 = scmp.eq.s32.totalorder %s20, 1
      %p103 = por %p101, %p102
      %p104 = scmp.ne.s32.totalorder %s96, %s99
      %p105 = scmp.eq.s32.totalorder %s20, 0
      %p106 = por %p104, %p105
      %p107 = scmp.ne.s32.totalorder %s96, %s99
      %p108 = scmp.eq.s32.totalorder %s25, 1
      %p109 = por %p107, %p108
      %p110 = scmp.ne.s32.totalorder %s99, %s100
      %p111 = scmp.eq.s32.totalorder %s25, 0
      %p112 = por %p110, %p111
      %p113 = scmp.ne.s32.totalorder %s99, %s100
      %p114 = scmp.eq.s32.totalorder %s26, 1
      %p115 = por %p113, %p114
      %p117 = scmp.ne.s32.totalorder %s100, %s116
      %p118 = scmp.eq.s32.totalorder %s26, 0
      %p119 = por %p117, %p118
      %s120 = ssub.s32 %s28, %s35
      %s121 = ssub.s32 %s27, %s39
      %s122 = sor.u32 %s120, %s121
      %p123 = scmp.eq.s32.totalorder %s122, 0
      %s125 = sadd.s32 %s124, 1
      %s126 = scalar_select %p123, %s124, %s125
      %p129 = pneg %p123
      %p130 = scmp.eq.s32.totalorder %s20, 1
      %p131 = por %p129, %p130
      %p132 = scmp.ne.s32.totalorder %s124, %s127
      %p133 = scmp.eq.s32.totalorder %s20, 0
      %p134 = por %p132, %p133
      %p135 = scmp.ne.s32.totalorder %s124, %s127
      %p136 = scmp.eq.s32.totalorder %s25, 1
      %p137 = por %p135, %p136
      %p138 = scmp.ne.s32.totalorder %s127, %s128
      %p139 = scmp.eq.s32.totalorder %s25, 0
      %p140 = por %p138, %p139
      %p141 = scmp.ne.s32.totalorder %s127, %s128
      %p142 = scmp.eq.s32.totalorder %s26, 1
      %p143 = por %p141, %p142
      %p145 = scmp.ne.s32.totalorder %s128, %s144
      %p146 = scmp.eq.s32.totalorder %s26, 0
      %p147 = por %p145, %p146
      %s148 = ssub.s32 %s28, %s35
      %s149 = ssub.s32 %s27, %s39
      %s150 = sor.u32 %s148, %s149
      %p151 = scmp.eq.s32.totalorder %s150, 0
      %s153 = sadd.s32 %s152, 1
      %s154 = scalar_select %p151, %s152, %s153
      %p157 = pneg %p151
      %p158 = scmp.eq.s32.totalorder %s20, 1
      %p159 = por %p157, %p158
      %p160 = scmp.ne.s32.totalorder %s152, %s155
      %p161 = scmp.eq.s32.totalorder %s20, 0
      %p162 = por %p160, %p161
      %p163 = scmp.ne.s32.totalorder %s152, %s155
      %p164 = scmp.eq.s32.totalorder %s25, 1
      %p165 = por %p163, %p164
      %p166 = scmp.ne.s32.totalorder %s155, %s156
      %p167 = scmp.eq.s32.totalorder %s25, 0
      %p168 = por %p166, %p167
      %p169 = scmp.ne.s32.totalorder %s155, %s156
      %p170 = scmp.eq.s32.totalorder %s26, 1
      %p171 = por %p169, %p170
      %p173 = scmp.ne.s32.totalorder %s156, %s172
      %p174 = scmp.eq.s32.totalorder %s26, 0
      %p175 = por %p173, %p174
      %p176 = scmp.le.s32.totalorder 1, %s20
      %p177 = scmp.lt.s32.totalorder %s20, 3
      %p178 = pnand %p176, %p177
      %p179 = pneg %p178
      // Predicated region
      $region9: #{tpu_custom_call.1} parent=5 // pred_check
        _
      $region10: #{tpu_custom_call.1} parent=5 // pred_check_branch
        %181 = sbr.rel (%p178) target = $region12
      $region11: #{tpu_custom_call.1} parent=5 // pred_region
        %s182 = ssub.s32 %s20, 1
        // Predicated region
        $region13: #{tpu_custom_call.1} parent=11 // pred_check
          %p183 = pneg %p58
        $region14: #{tpu_custom_call.1} parent=11 // pred_check_branch
          %185 = sbr.rel (%p183) target = $region16
        $region15: #{tpu_custom_call.1} parent=11 // pred_region
          %s186 = smul.u32 2, %s29
          %s188 = ssub.s32 2048, 2048
          %189 = vsyncadd [#allocation3], %s188
          %s190 = smul.addr %s186, 128
          %s191 = scalar_lea.hbm %s0, %s190
          %s192 = sshll.u32 [#allocation2], 4
          %s193 = int_to_ptr.vmem [resolvable:$true] %s192
          %198 = dma.hbm_to_vmem [thread:$0]  %s191, 2048, %s193, [#allocation3], 128, 128, 8
        $region16: #{tpu_custom_call.1} parent=11 // pred_fallthru
          _
      $region12: #{tpu_custom_call.1} parent=5 // pred_fallthru
        _
      %p199 = scmp.lt.s32.totalorder %s20, 2
      // Predicated region
      $region17: #{tpu_custom_call.1} parent=5 // pred_check
        %p200 = pneg %p199
      $region18: #{tpu_custom_call.1} parent=5 // pred_check_branch
        %202 = sbr.rel (%p200) target = $region20
      $region19: #{tpu_custom_call.1} parent=5 // pred_region
        // Predicated region
        $region21: #{tpu_custom_call.1} parent=19 // pred_check
          %p203 = pneg %p80
        $region22: #{tpu_custom_call.1} parent=19 // pred_check_branch
          %205 = sbr.rel (%p203) target = $region24
        $region23: #{tpu_custom_call.1} parent=19 // pred_region
          %s206 = sand.u32 %s20, 1
          %s207 = scalar_lea.sflag [#allocation6], %s206
          %s208 = sand.u32 %s70, 1
          %s209 = smul.addr %s208, 32
          %s210 = scalar_lea.vmem [#allocation5], %s209
          %s211 = smul.u32 2, %s27
          %s213 = ssub.s32 512, 512
          %214 = vsyncadd %s207, %s213
          %s215 = smul.addr %s28, 4
          %s216 = sadd.s32 %s211, %s215
          %s217 = smul.addr %s216, 128
          %s218 = scalar_lea.hbm %s1, %s217
          %s219 = sshll.u32 %s210, 4
          %s220 = int_to_ptr.vmem [resolvable:$true] %s219
          %225 = dma.hbm_to_vmem [thread:$0]  %s218, 512, %s220, %s207, 128, 128, 8
        $region24: #{tpu_custom_call.1} parent=19 // pred_fallthru
          _
        // Predicated region
        $region25: #{tpu_custom_call.1} parent=19 // pred_check
          %p226 = pneg %p106
        $region26: #{tpu_custom_call.1} parent=19 // pred_check_branch
          %228 = sbr.rel (%p226) target = $region28
        $region27: #{tpu_custom_call.1} parent=19 // pred_region
          %s229 = sand.u32 %s20, 1
          %s230 = scalar_lea.sflag [#allocation6], %s229
          %s231 = sand.u32 %s96, 1
          %s232 = smul.addr %s231, 32
          %s233 = scalar_lea.vmem [#allocation7], %s232
          %s235 = ssub.s32 512, 512
          %236 = vsyncadd %s230, %s235
          %s237 = smul.addr %s28, 4
          %s238 = smul.addr %s237, 128
          %s239 = scalar_lea.hbm %s2, %s238
          %s240 = sshll.u32 %s233, 4
          %s241 = int_to_ptr.vmem [resolvable:$true] %s240
          %246 = dma.hbm_to_vmem [thread:$0]  %s239, 512, %s241, %s230, 128, 128, 8
        $region28: #{tpu_custom_call.1} parent=19 // pred_fallthru
          _
        // Predicated region
        $region29: #{tpu_custom_call.1} parent=19 // pred_check
          %p247 = pneg %p134
        $region30: #{tpu_custom_call.1} parent=19 // pred_check_branch
          %249 = sbr.rel (%p247) target = $region32
        $region31: #{tpu_custom_call.1} parent=19 // pred_region
          %s250 = sand.u32 %s124, 1
          %s251 = scalar_lea.sflag [#allocation9], %s250
          %s252 = sand.u32 %s124, 1
          %s253 = smul.addr %s252, 32
          %s254 = scalar_lea.vmem [#allocation8], %s253
          %s255 = smul.u32 2, %s27
          %s257 = ssub.s32 512, 512
          %258 = vsyncadd %s251, %s257
          %s259 = smul.addr %s28, 4
          %s260 = sadd.s32 %s255, %s259
          %s261 = smul.addr %s260, 128
          %s262 = scalar_lea.hbm %s3, %s261
          %s263 = sshll.u32 %s254, 4
          %s264 = int_to_ptr.vmem [resolvable:$true] %s263
          %269 = dma.hbm_to_vmem [thread:$0]  %s262, 512, %s264, %s251, 128, 128, 8
        $region32: #{tpu_custom_call.1} parent=19 // pred_fallthru
          _
      $region20: #{tpu_custom_call.1} parent=5 // pred_fallthru
        _
      %p270 = scmp.le.s32.totalorder 1, %s20
      %p271 = scmp.lt.s32.totalorder %s20, 3
      %p272 = pnand %p270, %p271
      %p273 = pneg %p272
      // Predicated region
      $region33: #{tpu_custom_call.1} parent=5 // pred_check
        _
      $region34: #{tpu_custom_call.1} parent=5 // pred_check_branch
        %275 = sbr.rel (%p272) target = $region36
      $region35: #{tpu_custom_call.1} parent=5 // pred_region
        %s276 = ssub.s32 %s20, 1
        // Predicated region
        $region37: #{tpu_custom_call.1} parent=35 // pred_check
          %p277 = pneg %p58
        $region38: #{tpu_custom_call.1} parent=35 // pred_check_branch
          %279 = sbr.rel (%p277) target = $region40
        $region39: #{tpu_custom_call.1} parent=35 // pred_region
          %280 = dma.done [#allocation3], 2048
        $region40: #{tpu_custom_call.1} parent=35 // pred_fallthru
          _
        %s281 = sand.u32 %s25, 1
        %s282 = scalar_lea.sflag [#allocation6], %s281
        %s283 = sand.u32 %s73, 1
        %s284 = smul.addr %s283, 32
        %s285 = scalar_lea.vmem [#allocation5], %s284
        // Predicated region
        $region41: #{tpu_custom_call.1} parent=35 // pred_check
          %p286 = pneg %p86
        $region42: #{tpu_custom_call.1} parent=35 // pred_check_branch
          %288 = sbr.rel (%p286) target = $region44
        $region43: #{tpu_custom_call.1} parent=35 // pred_region
          %289 = dma.done %s282, 512
        $region44: #{tpu_custom_call.1} parent=35 // pred_fallthru
          _
        %s290 = sand.u32 %s25, 1
        %s291 = scalar_lea.sflag [#allocation6], %s290
        %s292 = sand.u32 %s99, 1
        %s293 = smul.addr %s292, 32
        %s294 = scalar_lea.vmem [#allocation7], %s293
        // Predicated region
        $region45: #{tpu_custom_call.1} parent=35 // pred_check
          %p295 = pneg %p112
        $region46: #{tpu_custom_call.1} parent=35 // pred_check_branch
          %297 = sbr.rel (%p295) target = $region48
        $region47: #{tpu_custom_call.1} parent=35 // pred_region
          %298 = dma.done %s291, 512
        $region48: #{tpu_custom_call.1} parent=35 // pred_fallthru
          _
        %s299 = sand.u32 %s127, 1
        %s300 = scalar_lea.sflag [#allocation9], %s299
        %s301 = sand.u32 %s127, 1
        %s302 = smul.addr %s301, 32
        %s303 = scalar_lea.vmem [#allocation8], %s302
        // Predicated region
        $region49: #{tpu_custom_call.1} parent=35 // pred_check
          %p304 = pneg %p140
        $region50: #{tpu_custom_call.1} parent=35 // pred_check_branch
          %306 = sbr.rel (%p304) target = $region52
        $region51: #{tpu_custom_call.1} parent=35 // pred_region
          %307 = dma.done %s300, 512
        $region52: #{tpu_custom_call.1} parent=35 // pred_fallthru
          _
        %p308 = pneg %p58
        %p309 = pneg %p55
        %s310 = sand.u32 %s25, 1
        %s311 = scalar_lea.sflag [#allocation6], %s310
        %s312 = sand.u32 %s73, 1
        %s313 = smul.addr %s312, 32
        %s314 = scalar_lea.vmem [#allocation5], %s313
        %p315 = pneg %p86
        %p316 = pneg %p83
        %s317 = sand.u32 %s25, 1
        %s318 = scalar_lea.sflag [#allocation6], %s317
        %s319 = sand.u32 %s99, 1
        %s320 = smul.addr %s319, 32
        %s321 = scalar_lea.vmem [#allocation7], %s320
        %p322 = pneg %p112
        %p323 = pneg %p109
        %s324 = sand.u32 %s127, 1
        %s325 = scalar_lea.sflag [#allocation9], %s324
        %s326 = sand.u32 %s127, 1
        %s327 = smul.addr %s326, 32
        %s328 = scalar_lea.vmem [#allocation8], %s327
        %p329 = pneg %p140
        %p330 = pneg %p137
        %p331 = pneg %p168
        %p332 = pneg %p165
        %s333 = sand.u32 %s155, 1
        %s334 = scalar_lea.sflag [#allocation4], %s333
        %s335 = sand.u32 %s155, 1
        %s336 = smul.addr %s335, 64
        %s337 = scalar_lea.vmem [#allocation10], %s336
        %s338 = smul.u32 2, %s29
        %s339 = smul.u32 2, %s29
        %s340 = smul.u32 2, %s29
        %s341 = smul.u32 2, %s29
        %v342 = vld [vmem:[%s285] sm:$0xff]
        %v343 = vld [vmem:[%s285 + $0x8] sm:$0xff]
        %v344 = vld [vmem:[%s294] sm:$0xff]
        %v345 = vld [vmem:[%s294 + $0x8] sm:$0xff]
        %vm346 = vcmask 130048
        %v348 = vsel %vm346, %v342, 0
        %v351 = vsel %vm346, %v343, 0
        %353 = vmatprep.subr.mxu0 0.0
        %354 = vmatpush1.msra.mxu0 0.0
        %355 = vmatprep.subr.mxu0 0.0
        %356 = vmatpush1.msra.mxu0 0.0
        %357 = vmatprep.subr.mxu0 0.0
        %358 = vmatpush1.msra.mxu0 0.0
        %359 = vmatprep.subr.mxu0 0.0
        %360 = vmatpush1.msra.mxu0 0.0
        %361 = vmatprep.subr.mxu0 0.0
        %362 = vmatpush1.msra.mxu0 0.0
        %363 = vmatprep.subr.mxu0 0.0
        %364 = vmatpush1.msra.mxu0 0.0
        %365 = vmatprep.subr.mxu0 0.0
        %366 = vmatpush1.msra.mxu0 0.0
        %367 = vmatprep.subr.mxu0 0.0
        %368 = vmatpush1.msra.mxu0 0.0
        %369 = vmatprep.subr.mxu0 0.0
        %370 = vmatpush1.msra.mxu0 0.0
        %371 = vmatprep.subr.mxu0 0.0
        %372 = vmatpush1.msra.mxu0 0.0
        %373 = vmatprep.subr.mxu0 0.0
        %374 = vmatpush1.msra.mxu0 0.0
        %375 = vmatprep.subr.mxu0 0.0
        %376 = vmatpush1.msra.mxu0 0.0
        %377 = vmatprep.subr.mxu0 0.0
        %378 = vmatpush1.msra.mxu0 0.0
        %379 = vmatprep.subr.mxu0 0.0
        %380 = vmatpush1.msra.mxu0 0.0
        %381 = vmatprep.subr.mxu0 0.0
        %382 = vmatpush1.msra.mxu0 %v345
        %383 = vmatprep.subr.mxu0 0.0
        %384 = vmatpush1.msra.mxu0 %v344
        %385 = vmatprep.subr.mxu0 0.0
        %386 = vmatpush2.msra.mxu0 0.0
        %387 = vmatprep.subr.mxu0 0.0
        %388 = vmatpush2.msra.mxu0 0.0
        %389 = vmatprep.subr.mxu0 0.0
        %390 = vmatpush2.msra.mxu0 0.0
        %391 = vmatprep.subr.mxu0 0.0
        %392 = vmatpush2.msra.mxu0 0.0
        %393 = vmatprep.subr.mxu0 0.0
        %394 = vmatpush2.msra.mxu0 0.0
        %395 = vmatprep.subr.mxu0 0.0
        %396 = vmatpush2.msra.mxu0 0.0
        %397 = vmatprep.subr.mxu0 0.0
        %398 = vmatpush2.msra.mxu0 0.0
        %399 = vmatprep.subr.mxu0 0.0
        %400 = vmatpush2.msra.mxu0 0.0
        %401 = vmatprep.subr.mxu0 0.0
        %402 = vmatpush2.msra.mxu0 0.0
        %403 = vmatprep.subr.mxu0 0.0
        %404 = vmatpush2.msra.mxu0 0.0
        %405 = vmatprep.subr.mxu0 0.0
        %406 = vmatpush2.msra.mxu0 0.0
        %407 = vmatprep.subr.mxu0 0.0
        %408 = vmatpush2.msra.mxu0 0.0
        %409 = vmatprep.subr.mxu0 0.0
        %410 = vmatpush2.msra.mxu0 0.0
        %411 = vmatprep.subr.mxu0 0.0
        %412 = vmatpush2.msra.mxu0 0.0
        %413 = vmatprep.subr.mxu0 0.0
        %414 = vmatpush2.msra.mxu0 0.0
        %415 = vmatprep.subr.mxu0 0.0
        %416 = vmatpush2.msra.mxu0 0.0
        %417 = vmatprep.mubr.f32.mxu0 0.0
        %418 = vmatmul.mubr.f32.gmra.mxu0 %v348
        %v419 = vpop.f32.mrf.mxu0
        %v420 = vadd.f32 0.0, %v419
        %v421 = vpop.f32.mrf.mxu0
        %422 = vmatprep.mubr.f32.mxu0 0.0
        %423 = vmatmul.mubr.f32.gmra.mxu0 %v351
        %v424 = vpop.f32.mrf.mxu0
        %v425 = vadd.f32 0.0, %v424
        %v426 = vpop.f32.mrf.mxu0
        %427 = vdwg.mxu0
        %v428 = vmul.f32 %v420, 0.5
        %v429 = vmul.f32 %v425, 0.5
        %v430 = vld [vmem:[%s303] sm:$0xff]
        %v431 = vld [vmem:[%s303 + $0x8] sm:$0xff]
        %v432 = vadd.f32 %v428, %v430
        %v433 = vadd.f32 %v429, %v431
        %s434 = scalar_lea.vmem %s285, 16 [#allocation5]
        %v435 = vld [vmem:[%s434] sm:$0xff]
        %v436 = vld [vmem:[%s434 + $0x8] sm:$0xff]
        %s437 = scalar_lea.vmem %s294, 16 [#allocation7]
        %v438 = vld [vmem:[%s437] sm:$0xff]
        %v439 = vld [vmem:[%s437 + $0x8] sm:$0xff]
        %v441 = vsel %vm346, %v435, 0
        %v444 = vsel %vm346, %v436, 0
        %446 = vmatprep.subr.mxu0 0.0
        %447 = vmatpush1.msra.mxu0 0.0
        %448 = vmatprep.subr.mxu0 0.0
        %449 = vmatpush1.msra.mxu0 0.0
        %450 = vmatprep.subr.mxu0 0.0
        %451 = vmatpush1.msra.mxu0 0.0
        %452 = vmatprep.subr.mxu0 0.0
        %453 = vmatpush1.msra.mxu0 0.0
        %454 = vmatprep.subr.mxu0 0.0
        %455 = vmatpush1.msra.mxu0 0.0
        %456 = vmatprep.subr.mxu0 0.0
        %457 = vmatpush1.msra.mxu0 0.0
        %458 = vmatprep.subr.mxu0 0.0
        %459 = vmatpush1.msra.mxu0 0.0
        %460 = vmatprep.subr.mxu0 0.0
        %461 = vmatpush1.msra.mxu0 0.0
        %462 = vmatprep.subr.mxu0 0.0
        %463 = vmatpush1.msra.mxu0 0.0
        %464 = vmatprep.subr.mxu0 0.0
        %465 = vmatpush1.msra.mxu0 0.0
        %466 = vmatprep.subr.mxu0 0.0
        %467 = vmatpush1.msra.mxu0 0.0
        %468 = vmatprep.subr.mxu0 0.0
        %469 = vmatpush1.msra.mxu0 0.0
        %470 = vmatprep.subr.mxu0 0.0
        %471 = vmatpush1.msra.mxu0 0.0
        %472 = vmatprep.subr.mxu0 0.0
        %473 = vmatpush1.msra.mxu0 0.0
        %474 = vmatprep.subr.mxu0 0.0
        %475 = vmatpush1.msra.mxu0 %v439
        %476 = vmatprep.subr.mxu0 0.0
        %477 = vmatpush1.msra.mxu0 %v438
        %478 = vmatprep.subr.mxu0 0.0
        %479 = vmatpush2.msra.mxu0 0.0
        %480 = vmatprep.subr.mxu0 0.0
        %481 = vmatpush2.msra.mxu0 0.0
        %482 = vmatprep.subr.mxu0 0.0
        %483 = vmatpush2.msra.mxu0 0.0
        %484 = vmatprep.subr.mxu0 0.0
        %485 = vmatpush2.msra.mxu0 0.0
        %486 = vmatprep.subr.mxu0 0.0
        %487 = vmatpush2.msra.mxu0 0.0
        %488 = vmatprep.subr.mxu0 0.0
        %489 = vmatpush2.msra.mxu0 0.0
        %490 = vmatprep.subr.mxu0 0.0
        %491 = vmatpush2.msra.mxu0 0.0
        %492 = vmatprep.subr.mxu0 0.0
        %493 = vmatpush2.msra.mxu0 0.0
        %494 = vmatprep.subr.mxu0 0.0
        %495 = vmatpush2.msra.mxu0 0.0
        %496 = vmatprep.subr.mxu0 0.0
        %497 = vmatpush2.msra.mxu0 0.0
        %498 = vmatprep.subr.mxu0 0.0
        %499 = vmatpush2.msra.mxu0 0.0
        %500 = vmatprep.subr.mxu0 0.0
        %501 = vmatpush2.msra.mxu0 0.0
        %502 = vmatprep.subr.mxu0 0.0
        %503 = vmatpush2.msra.mxu0 0.0
        %504 = vmatprep.subr.mxu0 0.0
        %505 = vmatpush2.msra.mxu0 0.0
        %506 = vmatprep.subr.mxu0 0.0
        %507 = vmatpush2.msra.mxu0 0.0
        %508 = vmatprep.subr.mxu0 0.0
        %509 = vmatpush2.msra.mxu0 0.0
        %510 = vmatprep.mubr.f32.mxu0 0.0
        %511 = vmatmul.mubr.f32.gmra.mxu0 %v441
        %v512 = vpop.f32.mrf.mxu0
        %v513 = vadd.f32 0.0, %v512
        %v514 = vpop.f32.mrf.mxu0
        %515 = vmatprep.mubr.f32.mxu0 0.0
        %516 = vmatmul.mubr.f32.gmra.mxu0 %v444
        %v517 = vpop.f32.mrf.mxu0
        %v518 = vadd.f32 0.0, %v517
        %v519 = vpop.f32.mrf.mxu0
        %520 = vdwg.mxu0
        %v521 = vmul.f32 %v513, 0.5
        %v522 = vmul.f32 %v518, 0.5
        %s523 = scalar_lea.vmem %s303, 16 [#allocation8]
        %v524 = vld [vmem:[%s523] sm:$0xff]
        %v525 = vld [vmem:[%s523 + $0x8] sm:$0xff]
        %v526 = vadd.f32 %v521, %v524
        %v527 = vadd.f32 %v522, %v525
        %v528 = vld [vmem:[#allocation2] sm:$0xff]
        %v529 = vld [vmem:[#allocation2 + $0x8] sm:$0xff]
        %v530 = vmul.f32 %v432, %v528
        %v531 = vmul.f32 %v433, %v529
        %s532 = scalar_lea.vmem [#allocation2], 64
        %v533 = vld [vmem:[%s532] sm:$0xff]
        %v534 = vld [vmem:[%s532 + $0x8] sm:$0xff]
        %v535 = vmul.f32 %v526, %v533
        %v536 = vmul.f32 %v527, %v534
        %v537 = vadd.f32 %v530, %v535
        %v538 = vadd.f32 %v531, %v536
        %539 = vst.msk [vmem:[%s337] sm:$0xff] %vm346, %v537
        %540 = vst.msk [vmem:[%s337 + $0x8] sm:$0xff] %vm346, %v538
        %s541 = scalar_lea.vmem [#allocation2], 16
        %v542 = vld [vmem:[%s541] sm:$0xff]
        %v543 = vld [vmem:[%s541 + $0x8] sm:$0xff]
        %v544 = vmul.f32 %v432, %v542
        %v545 = vmul.f32 %v433, %v543
        %s546 = scalar_lea.vmem [#allocation2], 80
        %v547 = vld [vmem:[%s546] sm:$0xff]
        %v548 = vld [vmem:[%s546 + $0x8] sm:$0xff]
        %v549 = vmul.f32 %v526, %v547
        %v550 = vmul.f32 %v527, %v548
        %v551 = vadd.f32 %v544, %v549
        %v552 = vadd.f32 %v545, %v550
        %s553 = scalar_lea.vmem %s337, 16 [#allocation10]
        %554 = vst.msk [vmem:[%s553] sm:$0xff] %vm346, %v551
        %555 = vst.msk [vmem:[%s553 + $0x8] sm:$0xff] %vm346, %v552
        %s556 = scalar_lea.vmem [#allocation2], 32
        %v557 = vld [vmem:[%s556] sm:$0xff]
        %v558 = vld [vmem:[%s556 + $0x8] sm:$0xff]
        %v559 = vmul.f32 %v432, %v557
        %v560 = vmul.f32 %v433, %v558
        %s561 = scalar_lea.vmem [#allocation2], 96
        %v562 = vld [vmem:[%s561] sm:$0xff]
        %v563 = vld [vmem:[%s561 + $0x8] sm:$0xff]
        %v564 = vmul.f32 %v526, %v562
        %v565 = vmul.f32 %v527, %v563
        %v566 = vadd.f32 %v559, %v564
        %v567 = vadd.f32 %v560, %v565
        %s568 = scalar_lea.vmem %s337, 32 [#allocation10]
        %569 = vst.msk [vmem:[%s568] sm:$0xff] %vm346, %v566
        %570 = vst.msk [vmem:[%s568 + $0x8] sm:$0xff] %vm346, %v567
        %s571 = scalar_lea.vmem [#allocation2], 48
        %v572 = vld [vmem:[%s571] sm:$0xff]
        %v573 = vld [vmem:[%s571 + $0x8] sm:$0xff]
        %v574 = vmul.f32 %v432, %v572
        %v575 = vmul.f32 %v433, %v573
        %s576 = scalar_lea.vmem [#allocation2], 112
        %v577 = vld [vmem:[%s576] sm:$0xff]
        %v578 = vld [vmem:[%s576 + $0x8] sm:$0xff]
        %v579 = vmul.f32 %v526, %v577
        %v580 = vmul.f32 %v527, %v578
        %v581 = vadd.f32 %v574, %v579
        %v582 = vadd.f32 %v575, %v580
        %s583 = scalar_lea.vmem %s337, 48 [#allocation10]
        %584 = vst.msk [vmem:[%s583] sm:$0xff] %vm346, %v581
        %585 = vst.msk [vmem:[%s583 + $0x8] sm:$0xff] %vm346, %v582
        %s586 = sand.u32 %s155, 1
        %s587 = scalar_lea.sflag [#allocation4], %s586
        %s588 = sand.u32 %s155, 1
        %s589 = smul.addr %s588, 64
        %s590 = scalar_lea.vmem [#allocation10], %s589
        // Predicated region
        $region53: #{tpu_custom_call.1} parent=35 // pred_check
          %p591 = pneg %p165
        $region54: #{tpu_custom_call.1} parent=35 // pred_check_branch
          %593 = sbr.rel (%p591) target = $region56
        $region55: #{tpu_custom_call.1} parent=35 // pred_region
          %s594 = smul.u32 2, %s29
          %s596 = ssub.s32 1024, 1024
          %597 = vsyncadd %s587, %s596
          %s598 = smul.addr %s30, 8
          %s599 = sadd.s32 %s594, %s598
          %s600 = smul.addr %s599, 128
          %s601 = scalar_lea.hbm %s4, %s600
          %s602 = sshll.u32 %s590, 4
          %s603 = int_to_ptr.vmem [resolvable:$true] %s602
          %608 = dma.vmem_to_hbm [thread:$0]  %s603, 1024, %s601, %s587, 128, 128, 8
        $region56: #{tpu_custom_call.1} parent=35 // pred_fallthru
          _
      $region36: #{tpu_custom_call.1} parent=5 // pred_fallthru
        _
      %p609 = scmp.le.s32.totalorder 2, %s20
      // Predicated region
      $region57: #{tpu_custom_call.1} parent=5 // pred_check
        %p610 = pneg %p609
      $region58: #{tpu_custom_call.1} parent=5 // pred_check_branch
        %612 = sbr.rel (%p610) target = $region60
      $region59: #{tpu_custom_call.1} parent=5 // pred_region
        %s613 = ssub.s32 %s20, 2
        // Predicated region
        $region61: #{tpu_custom_call.1} parent=59 // pred_check
          %p614 = pneg %p171
        $region62: #{tpu_custom_call.1} parent=59 // pred_check_branch
          %616 = sbr.rel (%p614) target = $region64
        $region63: #{tpu_custom_call.1} parent=59 // pred_region
          %s617 = sand.u32 %s156, 1
          %s618 = scalar_lea.sflag [#allocation4], %s617
          %s619 = sand.u32 %s156, 1
          %s620 = smul.addr %s619, 64
          %s621 = scalar_lea.vmem [#allocation10], %s620
          %622 = dma.done %s618, 1024
        $region64: #{tpu_custom_call.1} parent=59 // pred_fallthru
          _
      $region60: #{tpu_custom_call.1} parent=5 // pred_fallthru
        _
    $region6: #{tpu_custom_call.1} parent=1 // loop_footer
      %s24 = sadd.s32 1, %s20
    $region7: #{tpu_custom_call.1} parent=1 // loop_footer_branch
      %19 = sbr.rel target = $region3
    $region8: #{tpu_custom_call.1} parent=1 // loop_exit
      _
    %623 = vsyncpa [#allocation3], 1
    %s624 = scalar_lea.sflag [#allocation3], 1
    %625 = vsyncpa %s624, 1
    %626 = vsyncpa [#allocation6], 1
    %s627 = scalar_lea.sflag [#allocation6], 1
    %628 = vsyncpa %s627, 1
    %629 = vsyncpa [#allocation9], 1
    %s630 = scalar_lea.sflag [#allocation9], 1
    %631 = vsyncpa %s630, 1
    %632 = vsyncpa [#allocation4], 1
    %s633 = scalar_lea.sflag [#allocation4], 1
    %634 = vsyncpa %s633, 1

</llo_original>
